<compile_context>
chip_gen: v6e
topology: v6e:2x2x1
jax: 0.10.0
libtpu: 0.0.40
codegen_flags: <defaults>
</compile_context>

<pallas_src>
import functools

import jax
import jax.numpy as jnp
from jax.experimental import pallas as pl
from jax.experimental.pallas import tpu as pltpu

EPS = 1e-5
LANE = 128  # pad output channels to this -> lane-dense stores / full MXU N width


# ----------------------------------------------------------------------------- kernel
def _residual_block_kernel(has_proj, stride, ksize, l1, l2, pad2, *refs):
    """Fused residual block for one batch element (all statics bound via partial).

    conv1(tap loop) + bias + relu + bn1  -> staged in VMEM scratch (time-padded)
    conv2(tap loop) + shortcut + relu + bn2 -> lane-dense output block.
    """
    if has_proj:
        x_ref, xs_ref, w1_ref, w2_ref, wd_ref, vec_ref, o_ref, h1p_ref = refs
    else:
        x_ref, xs_ref, w1_ref, w2_ref, vec_ref, o_ref, h1p_ref = refs
        wd_ref = None

    f32 = jnp.float32
    cpad = o_ref.shape[-1]

    vecs = vec_ref[...]                                   # (6, cpad) f32
    b1, sc1, sh1 = vecs[0:1], vecs[1:2], vecs[2:3]
    b2a, sc2, sh2 = vecs[3:4], vecs[4:5], vecs[5:6]

    # ---- conv1 + bias + relu + dropout(identity) + bn1 --------------------------
    # x_ref: (stride, Lph, Cin) bf16 phase-split, time-padded input.
    xph = [x_ref[p] for p in range(stride)]               # each (Lph, Cin) bf16
    acc1 = jnp.zeros((l1, cpad), f32)
    for k in range(ksize):                                # unrolled tap loop
        p, j = k % stride, k // stride
        acc1 = acc1 + jnp.dot(xph[p][j:j + l1], w1_ref[k],
                              preferred_element_type=f32)
    h1 = jnp.maximum(acc1 + b1, 0.0) * sc1 + sh1          # (l1, cpad) f32

    # Stage bn1 output in a time-padded VMEM scratch; the zero strips reproduce
    # conv2's zero padding (padding is applied AFTER bn1, matching the module).
    if pad2 > 0:
        zstrip = jnp.zeros((pad2, cpad), f32)
        h1p_ref[pl.ds(0, pad2), :] = zstrip
        h1p_ref[pl.ds(pad2 + l1, pad2), :] = zstrip
    h1p_ref[pl.ds(pad2, l1), :] = h1

    # ---- conv2 + shortcut + residual add + relu + dropout(identity) + bn2 -------
    acc2 = jnp.zeros((l2, cpad), f32)
    for k in range(ksize):                                # unrolled tap loop
        acc2 = acc2 + jnp.dot(h1p_ref[pl.ds(k, l2), :].astype(jnp.bfloat16),
                              w2_ref[k], preferred_element_type=f32)
    if has_proj:
        # 1x1-conv shortcut with BN_d folded into wd / b2a.
        acc2 = acc2 + jnp.dot(xs_ref[...], wd_ref[...], preferred_element_type=f32)
        z = jnp.maximum(acc2 + b2a, 0.0)
    else:
        # Identity shortcut: added in f32, no matmul, no bf16 rounding.
        z = jnp.maximum(acc2 + b2a + xs_ref[...], 0.0)
    o_ref[...] = (z * sc2 + sh2).astype(o_ref.dtype)


# ----------------------------------------------------------------------------- helpers
def _round_up(x, m):
    return (x + m - 1) // m * m


def _bn_fold(gamma, beta, mean, var):
    scale = gamma / jnp.sqrt(var + EPS)
    shift = beta - mean * scale
    return scale, shift


def _pad_vec(v, n):
    v = v.astype(jnp.float32)
    return jnp.pad(v, (0, n - v.shape[0]))


def _run_block(xph, xs, w1s, w2s, wd, vecs, *, has_proj, stride, ksize, l1, l2, pad2):
    n, s, lph, cin = xph.shape
    cpad = w1s.shape[-1]
    lp2 = l1 + 2 * pad2

    kern = functools.partial(_residual_block_kernel,
                             has_proj, stride, ksize, l1, l2, pad2)

    in_specs = [
        pl.BlockSpec((None, s, lph, cin), lambda b: (b, 0, 0, 0)),        # x phases
        pl.BlockSpec((None,) + xs.shape[1:], lambda b: (b, 0, 0)),        # shortcut in
        pl.BlockSpec(w1s.shape, lambda b: (0, 0, 0)),                     # conv1 taps
        pl.BlockSpec(w2s.shape, lambda b: (0, 0, 0)),                     # conv2 taps
    ]
    args = [xph, xs, w1s, w2s]
    if has_proj:
        in_specs.append(pl.BlockSpec(wd.shape, lambda b: (0, 0)))         # 1x1 proj
        args.append(wd)
    in_specs.append(pl.BlockSpec(vecs.shape, lambda b: (0, 0)))           # epilogue vecs
    args.append(vecs)

    return pl.pallas_call(
        kern,
        out_shape=jax.ShapeDtypeStruct((n, l2, cpad), jnp.float32),
        grid=(n,),
        in_specs=in_specs,
        out_specs=pl.BlockSpec((None, l2, cpad), lambda b: (b, 0, 0)),
        scratch_shapes=[pltpu.VMEM((lp2, cpad), jnp.float32)],            # padded h1
        compiler_params=pltpu.CompilerParams(dimension_semantics=("parallel",)),
    )(*args)


# ----------------------------------------------------------------------------- module
def init_params(key, in_channels, out_channels, kernel_size):
    ks = jax.random.split(key, 9)
    p = {}
    p["w1"] = 0.1 * jax.random.normal(ks[0], (out_channels, in_channels, kernel_size), jnp.float32)
    p["b1"] = 0.05 * jax.random.normal(ks[1], (out_channels,), jnp.float32)
    p["w2"] = 0.1 * jax.random.normal(ks[2], (out_channels, out_channels, kernel_size), jnp.float32)
    p["b2"] = 0.05 * jax.random.normal(ks[3], (out_channels,), jnp.float32)
    p["wd"] = 0.1 * jax.random.normal(ks[4], (out_channels, in_channels, 1), jnp.float32)
    p["bd"] = 0.05 * jax.random.normal(ks[5], (out_channels,), jnp.float32)
    for i, name in enumerate(("bn1", "bn2", "bnd")):
        kk = jax.random.split(ks[6 + i], 4)
        p[name] = dict(
            gamma=1.0 + 0.1 * jax.random.normal(kk[0], (out_channels,), jnp.float32),
            beta=0.1 * jax.random.normal(kk[1], (out_channels,), jnp.float32),
            mean=0.1 * jax.random.normal(kk[2], (out_channels,), jnp.float32),
            var=jnp.abs(jax.random.normal(kk[3], (out_channels,), jnp.float32)) + 0.5,
        )
    return p


def residual_block_forward(x, params, *, downsample, kernel_size):
    n, cin, l = x.shape
    cout = params["w1"].shape[0]
    stride = 2 if downsample else 1
    pad1 = (stride - 1 + kernel_size - stride) // 2       # module's padding formula
    pad2 = kernel_size // 2
    cpad = _round_up(cout, LANE)
    has_proj = downsample or (cin != cout)

    lp1 = l + 2 * pad1
    l1 = (lp1 - kernel_size) // stride + 1                # conv1 output length
    l2 = l1 + 2 * pad2 - kernel_size + 1                  # conv2 output length
    ld = (l - 1) // stride + 1                            # shortcut output length
    assert l2 == ld, (
        f"residual add length mismatch (conv2 {l2} vs shortcut {ld}); the PyTorch "
        "module itself requires matching lengths (use odd L when downsampling).")

    # Channel-last input, time-padded for conv1, split into `stride` phases so the
    # in-kernel tap loop only ever needs contiguous static-offset slices.
    x_nlc = x.transpose(0, 2, 1)                          # (N, L, Cin)
    x_pad = jnp.pad(x_nlc, ((0, 0), (pad1, pad1), (0, 0)))
    lph = -(-lp1 // stride)
    phases = []
    for p in range(stride):
        ph = x_pad[:, p::stride, :]
        ph = jnp.pad(ph, ((0, 0), (0, lph - ph.shape[1]), (0, 0)))
        phases.append(ph)
    xph = jnp.stack(phases, axis=1).astype(jnp.bfloat16)  # (N, stride, Lph, Cin)

    sc1, sh1 = _bn_fold(**params["bn1"])
    sc2, sh2 = _bn_fold(**params["bn2"])

    # Weights: tap-major, channel-last, out channels lane-padded to 128.
    w1s = jnp.pad(params["w1"].transpose(2, 1, 0),                     # (K, Cin, Cout)
                  ((0, 0), (0, 0), (0, cpad - cout))).astype(jnp.bfloat16)
    w2s = jnp.pad(params["w2"].transpose(2, 1, 0),                     # (K, Cout, Cout)
                  ((0, 0), (0, cpad - cout), (0, cpad - cout))).astype(jnp.bfloat16)

    if has_proj:
        scd, shd = _bn_fold(**params["bnd"])
        wd = params["wd"].reshape(cout, cin).T * scd[None, :]          # fold BN_d scale
        wd = jnp.pad(wd, ((0, 0), (0, cpad - cout))).astype(jnp.bfloat16)
        b2_add = params["b2"] + params["bd"] * scd + shd               # bias + BN_d shift
        xs = x_nlc[:, ::stride, :].astype(jnp.bfloat16)                # (N, Ld, Cin)
    else:
        wd = None
        b2_add = params["b2"]
        # f32 identity skip, channels zero-padded to the lane-padded width.
        xs = jnp.pad(x_nlc, ((0, 0), (0, 0), (0, cpad - cout)))        # (N, L, cpad)

    vecs = jnp.stack([
        _pad_vec(params["b1"], cpad),
        _pad_vec(sc1, cpad),
        _pad_vec(sh1, cpad),
        _pad_vec(b2_add, cpad),
        _pad_vec(sc2, cpad),
        _pad_vec(sh2, cpad),
    ], axis=0)                                                         # (6, cpad) f32

    out = _run_block(xph, xs, w1s, w2s, wd, vecs,
                     has_proj=has_proj, stride=stride, ksize=kernel_size,
                     l1=l1, l2=l2, pad2=pad2)
    # TODO(synk): keep channel-last / lane-padded between stacked blocks to avoid
    # this re-layout pass.
    return out[:, :, :cout].transpose(0, 2, 1)                         # (N, Cout, Lout)


# ----------------------------------------------------------------------------- reference
def _conv1d_ref(x, w, b, stride, padding):
    y = jax.lax.conv_general_dilated(
        x, w, window_strides=(stride,), padding=[(padding, padding)],
        dimension_numbers=("NCH", "OIH", "NCH"))
    return y + b[None, :, None]


def _bn_ref(x, gamma, beta, mean, var):
    return (x - mean[None, :, None]) / jnp.sqrt(var[None, :, None] + EPS) \
        * gamma[None, :, None] + beta[None, :, None]


def reference_forward(x, p, *, downsample, kernel_size):
    stride = 2 if downsample else 1
    pad1 = (stride - 1 + kernel_size - stride) // 2
    cin, cout = x.shape[1], p["w1"].shape[0]
    out = _conv1d_ref(x, p["w1"], p["b1"], stride, pad1)
    out = jax.nn.relu(out)                      # dropout: identity in eval mode
    out = _bn_ref(out, **p["bn1"])
    out = _conv1d_ref(out, p["w2"], p["b2"], 1, kernel_size // 2)
    if downsample or cin != cout:
        sc = _conv1d_ref(x, p["wd"], p["bd"], stride, 0)
        sc = _bn_ref(sc, **p["bnd"])
    else:
        sc = x
    out = out + sc
    out = jax.nn.relu(out)                      # dropout: identity in eval mode
    out = _bn_ref(out, **p["bn2"])
    return out


# ----------------------------------------------------------------------------- main
if __name__ == "__main__":
    key = jax.random.PRNGKey(0)

    configs = [
        # (N, Cin, Cout, L, K, downsample)
        (2, 4, 8, 17, 8, True),    # projection shortcut, stride-2 (odd L required)
        (2, 8, 8, 16, 8, False),   # identity shortcut
    ]
    for i, (N, CIN, COUT, L, KSIZE, DOWNSAMPLE) in enumerate(configs):
        k_x, k_p = jax.random.split(jax.random.fold_in(key, i))
        x = jax.random.normal(k_x, (N, CIN, L), jnp.float32)
        params = init_params(k_p, CIN, COUT, KSIZE)

        fwd = functools.partial(residual_block_forward,
                                downsample=DOWNSAMPLE, kernel_size=KSIZE)
        out = jax.block_until_ready(jax.jit(fwd)(x, params))

        ref = reference_forward(x, params, downsample=DOWNSAMPLE, kernel_size=KSIZE)
        assert out.shape == ref.shape, (out.shape, ref.shape)
        # bf16 MXU inputs with f32 accumulation: tolerance loosened slightly vs pure-f32.
        assert jnp.allclose(out, ref, rtol=3e-2, atol=3e-2), \
            float(jnp.max(jnp.abs(out - ref)))

    print("KERNEL_OK")
</pallas_src>

<mosaic_0001>
module attributes {stable_mosaic.version = 11 : i64} {
  func.func @_residual_block_kernel(%arg0: i32, %arg1: memref<1x2x12x4xbf16, #tpu.memory_space<vmem>>, %arg2: memref<1x9x4xbf16, #tpu.memory_space<vmem>>, %arg3: memref<8x4x128xbf16, #tpu.memory_space<vmem>>, %arg4: memref<8x128x128xbf16, #tpu.memory_space<vmem>>, %arg5: memref<4x128xbf16, #tpu.memory_space<vmem>>, %arg6: memref<6x128xf32, #tpu.memory_space<vmem>>, %arg7: memref<1x9x128xf32, #tpu.memory_space<vmem>>, %arg8: memref<16x128xf32, #tpu.memory_space<vmem>>) attributes {dimension_semantics = [#tpu.dimension_semantics<parallel>], iteration_bounds = array<i64: 2>, scalar_prefetch = 0 : i64, scratch_operands = 1 : i64, tpu.core_type = #tpu.core_type<tc>, window_params = [{transform_indices = @transform_0, window_bounds = array<i64: 1, 2, 12, 4>}, {transform_indices = @transform_1, window_bounds = array<i64: 1, 9, 4>}, {pipeline_mode = #tpu.pipeline_mode<synchronous>, transform_indices = @transform_2, window_bounds = array<i64: 8, 4, 128>}, {pipeline_mode = #tpu.pipeline_mode<synchronous>, transform_indices = @transform_3, window_bounds = array<i64: 8, 128, 128>}, {pipeline_mode = #tpu.pipeline_mode<synchronous>, transform_indices = @transform_4, window_bounds = array<i64: 4, 128>}, {pipeline_mode = #tpu.pipeline_mode<synchronous>, transform_indices = @transform_5, window_bounds = array<i64: 6, 128>}, {transform_indices = @transform_6, window_bounds = array<i64: 1, 9, 128>}]} {
    %c0 = arith.constant 0 : index
    %c0_0 = arith.constant 0 : index
    %0 = vector.load %arg6[%c0, %c0_0] : memref<6x128xf32, #tpu.memory_space<vmem>>, vector<6x128xf32>
    %1 = vector.extract_strided_slice %0 {offsets = [0, 0], sizes = [1, 128], strides = [1, 1]} : vector<6x128xf32> to vector<1x128xf32>
    %2 = vector.extract_strided_slice %0 {offsets = [1, 0], sizes = [1, 128], strides = [1, 1]} : vector<6x128xf32> to vector<1x128xf32>
    %3 = vector.extract_strided_slice %0 {offsets = [2, 0], sizes = [1, 128], strides = [1, 1]} : vector<6x128xf32> to vector<1x128xf32>
    %4 = vector.extract_strided_slice %0 {offsets = [3, 0], sizes = [1, 128], strides = [1, 1]} : vector<6x128xf32> to vector<1x128xf32>
    %5 = vector.extract_strided_slice %0 {offsets = [4, 0], sizes = [1, 128], strides = [1, 1]} : vector<6x128xf32> to vector<1x128xf32>
    %6 = vector.extract_strided_slice %0 {offsets = [5, 0], sizes = [1, 128], strides = [1, 1]} : vector<6x128xf32> to vector<1x128xf32>
    %c0_1 = arith.constant 0 : index
    %c0_2 = arith.constant 0 : index
    %c0_3 = arith.constant 0 : index
    %c0_4 = arith.constant 0 : index
    %7 = vector.load %arg1[%c0_1, %c0_2, %c0_3, %c0_4] : memref<1x2x12x4xbf16, #tpu.memory_space<vmem>>, vector<1x1x12x4xbf16>
    %8 = vector.shape_cast %7 : vector<1x1x12x4xbf16> to vector<12x4xbf16>
    %c0_5 = arith.constant 0 : index
    %c1 = arith.constant 1 : index
    %c0_6 = arith.constant 0 : index
    %c0_7 = arith.constant 0 : index
    %9 = vector.load %arg1[%c0_5, %c1, %c0_6, %c0_7] : memref<1x2x12x4xbf16, #tpu.memory_space<vmem>>, vector<1x1x12x4xbf16>
    %10 = vector.shape_cast %9 : vector<1x1x12x4xbf16> to vector<12x4xbf16>
    %cst = arith.constant 0.000000e+00 : f32
    %11 = vector.broadcast %cst : f32 to vector<8x128xf32>
    %12 = vector.extract_strided_slice %8 {offsets = [0, 0], sizes = [8, 4], strides = [1, 1]} : vector<12x4xbf16> to vector<8x4xbf16>
    %c0_8 = arith.constant 0 : index
    %c0_9 = arith.constant 0 : index
    %c0_10 = arith.constant 0 : index
    %13 = vector.load %arg3[%c0_8, %c0_9, %c0_10] : memref<8x4x128xbf16, #tpu.memory_space<vmem>>, vector<1x4x128xbf16>
    %14 = vector.shape_cast %13 : vector<1x4x128xbf16> to vector<4x128xbf16>
    %cst_11 = arith.constant dense<0.000000e+00> : vector<8x128xf32>
    %15 = tpu.matmul %12, %14, %cst_11 {dimension_numbers = #tpu.dot_dimension_numbers<[1], [0], [0], [1], [0, 0, 1, 1], [], []>} : vector<8x4xbf16>, vector<4x128xbf16>, vector<8x128xf32> -> vector<8x128xf32>
    %16 = arith.addf %11, %15 : vector<8x128xf32>
    %17 = vector.extract_strided_slice %10 {offsets = [0, 0], sizes = [8, 4], strides = [1, 1]} : vector<12x4xbf16> to vector<8x4xbf16>
    %c1_12 = arith.constant 1 : index
    %c0_13 = arith.constant 0 : index
    %c0_14 = arith.constant 0 : index
    %18 = vector.load %arg3[%c1_12, %c0_13, %c0_14] : memref<8x4x128xbf16, #tpu.memory_space<vmem>>, vector<1x4x128xbf16>
    %19 = vector.shape_cast %18 : vector<1x4x128xbf16> to vector<4x128xbf16>
    %cst_15 = arith.constant dense<0.000000e+00> : vector<8x128xf32>
    %20 = tpu.matmul %17, %19, %cst_15 {dimension_numbers = #tpu.dot_dimension_numbers<[1], [0], [0], [1], [0, 0, 1, 1], [], []>} : vector<8x4xbf16>, vector<4x128xbf16>, vector<8x128xf32> -> vector<8x128xf32>
    %21 = arith.addf %16, %20 : vector<8x128xf32>
    %22 = vector.extract_strided_slice %8 {offsets = [1, 0], sizes = [8, 4], strides = [1, 1]} : vector<12x4xbf16> to vector<8x4xbf16>
    %c2 = arith.constant 2 : index
    %c0_16 = arith.constant 0 : index
    %c0_17 = arith.constant 0 : index
    %23 = vector.load %arg3[%c2, %c0_16, %c0_17] : memref<8x4x128xbf16, #tpu.memory_space<vmem>>, vector<1x4x128xbf16>
    %24 = vector.shape_cast %23 : vector<1x4x128xbf16> to vector<4x128xbf16>
    %cst_18 = arith.constant dense<0.000000e+00> : vector<8x128xf32>
    %25 = tpu.matmul %22, %24, %cst_18 {dimension_numbers = #tpu.dot_dimension_numbers<[1], [0], [0], [1], [0, 0, 1, 1], [], []>} : vector<8x4xbf16>, vector<4x128xbf16>, vector<8x128xf32> -> vector<8x128xf32>
    %26 = arith.addf %21, %25 : vector<8x128xf32>
    %27 = vector.extract_strided_slice %10 {offsets = [1, 0], sizes = [8, 4], strides = [1, 1]} : vector<12x4xbf16> to vector<8x4xbf16>
    %c3 = arith.constant 3 : index
    %c0_19 = arith.constant 0 : index
    %c0_20 = arith.constant 0 : index
    %28 = vector.load %arg3[%c3, %c0_19, %c0_20] : memref<8x4x128xbf16, #tpu.memory_space<vmem>>, vector<1x4x128xbf16>
    %29 = vector.shape_cast %28 : vector<1x4x128xbf16> to vector<4x128xbf16>
    %cst_21 = arith.constant dense<0.000000e+00> : vector<8x128xf32>
    %30 = tpu.matmul %27, %29, %cst_21 {dimension_numbers = #tpu.dot_dimension_numbers<[1], [0], [0], [1], [0, 0, 1, 1], [], []>} : vector<8x4xbf16>, vector<4x128xbf16>, vector<8x128xf32> -> vector<8x128xf32>
    %31 = arith.addf %26, %30 : vector<8x128xf32>
    %32 = vector.extract_strided_slice %8 {offsets = [2, 0], sizes = [8, 4], strides = [1, 1]} : vector<12x4xbf16> to vector<8x4xbf16>
    %c4 = arith.constant 4 : index
    %c0_22 = arith.constant 0 : index
    %c0_23 = arith.constant 0 : index
    %33 = vector.load %arg3[%c4, %c0_22, %c0_23] : memref<8x4x128xbf16, #tpu.memory_space<vmem>>, vector<1x4x128xbf16>
    %34 = vector.shape_cast %33 : vector<1x4x128xbf16> to vector<4x128xbf16>
    %cst_24 = arith.constant dense<0.000000e+00> : vector<8x128xf32>
    %35 = tpu.matmul %32, %34, %cst_24 {dimension_numbers = #tpu.dot_dimension_numbers<[1], [0], [0], [1], [0, 0, 1, 1], [], []>} : vector<8x4xbf16>, vector<4x128xbf16>, vector<8x128xf32> -> vector<8x128xf32>
    %36 = arith.addf %31, %35 : vector<8x128xf32>
    %37 = vector.extract_strided_slice %10 {offsets = [2, 0], sizes = [8, 4], strides = [1, 1]} : vector<12x4xbf16> to vector<8x4xbf16>
    %c5 = arith.constant 5 : index
    %c0_25 = arith.constant 0 : index
    %c0_26 = arith.constant 0 : index
    %38 = vector.load %arg3[%c5, %c0_25, %c0_26] : memref<8x4x128xbf16, #tpu.memory_space<vmem>>, vector<1x4x128xbf16>
    %39 = vector.shape_cast %38 : vector<1x4x128xbf16> to vector<4x128xbf16>
    %cst_27 = arith.constant dense<0.000000e+00> : vector<8x128xf32>
    %40 = tpu.matmul %37, %39, %cst_27 {dimension_numbers = #tpu.dot_dimension_numbers<[1], [0], [0], [1], [0, 0, 1, 1], [], []>} : vector<8x4xbf16>, vector<4x128xbf16>, vector<8x128xf32> -> vector<8x128xf32>
    %41 = arith.addf %36, %40 : vector<8x128xf32>
    %42 = vector.extract_strided_slice %8 {offsets = [3, 0], sizes = [8, 4], strides = [1, 1]} : vector<12x4xbf16> to vector<8x4xbf16>
    %c6 = arith.constant 6 : index
    %c0_28 = arith.constant 0 : index
    %c0_29 = arith.constant 0 : index
    %43 = vector.load %arg3[%c6, %c0_28, %c0_29] : memref<8x4x128xbf16, #tpu.memory_space<vmem>>, vector<1x4x128xbf16>
    %44 = vector.shape_cast %43 : vector<1x4x128xbf16> to vector<4x128xbf16>
    %cst_30 = arith.constant dense<0.000000e+00> : vector<8x128xf32>
    %45 = tpu.matmul %42, %44, %cst_30 {dimension_numbers = #tpu.dot_dimension_numbers<[1], [0], [0], [1], [0, 0, 1, 1], [], []>} : vector<8x4xbf16>, vector<4x128xbf16>, vector<8x128xf32> -> vector<8x128xf32>
    %46 = arith.addf %41, %45 : vector<8x128xf32>
    %47 = vector.extract_strided_slice %10 {offsets = [3, 0], sizes = [8, 4], strides = [1, 1]} : vector<12x4xbf16> to vector<8x4xbf16>
    %c7 = arith.constant 7 : index
    %c0_31 = arith.constant 0 : index
    %c0_32 = arith.constant 0 : index
    %48 = vector.load %arg3[%c7, %c0_31, %c0_32] : memref<8x4x128xbf16, #tpu.memory_space<vmem>>, vector<1x4x128xbf16>
    %49 = vector.shape_cast %48 : vector<1x4x128xbf16> to vector<4x128xbf16>
    %cst_33 = arith.constant dense<0.000000e+00> : vector<8x128xf32>
    %50 = tpu.matmul %47, %49, %cst_33 {dimension_numbers = #tpu.dot_dimension_numbers<[1], [0], [0], [1], [0, 0, 1, 1], [], []>} : vector<8x4xbf16>, vector<4x128xbf16>, vector<8x128xf32> -> vector<8x128xf32>
    %51 = arith.addf %46, %50 : vector<8x128xf32>
    %52 = vector.broadcast %1 : vector<1x128xf32> to vector<8x128xf32>
    %53 = arith.addf %51, %52 : vector<8x128xf32>
    %cst_34 = arith.constant 0.000000e+00 : f32
    %54 = vector.broadcast %cst_34 : f32 to vector<8x128xf32>
    %55 = arith.maximumf %53, %54 : vector<8x128xf32>
    %56 = vector.broadcast %2 : vector<1x128xf32> to vector<8x128xf32>
    %57 = arith.mulf %55, %56 : vector<8x128xf32>
    %58 = vector.broadcast %3 : vector<1x128xf32> to vector<8x128xf32>
    %59 = arith.addf %57, %58 : vector<8x128xf32>
    %cst_35 = arith.constant 0.000000e+00 : f32
    %60 = vector.broadcast %cst_35 : f32 to vector<4x128xf32>
    %c0_36 = arith.constant 0 : index
    %c0_37 = arith.constant 0 : index
    %61 = vector.load %arg8[%c0_36, %c0_37] : memref<16x128xf32, #tpu.memory_space<vmem>>, vector<4x128xf32>
    tpu.vector_store %arg8[%c0_36, %c0_37], %60 {strides = array<i32>} : memref<16x128xf32, #tpu.memory_space<vmem>>, vector<4x128xf32>,
    %c12 = arith.constant 12 : index
    %c0_38 = arith.constant 0 : index
    %62 = vector.load %arg8[%c12, %c0_38] : memref<16x128xf32, #tpu.memory_space<vmem>>, vector<4x128xf32>
    tpu.vector_store %arg8[%c12, %c0_38], %60 {strides = array<i32>} : memref<16x128xf32, #tpu.memory_space<vmem>>, vector<4x128xf32>,
    %c4_39 = arith.constant 4 : index
    %c0_40 = arith.constant 0 : index
    %63 = vector.load %arg8[%c4_39, %c0_40] : memref<16x128xf32, #tpu.memory_space<vmem>>, vector<8x128xf32>
    tpu.vector_store %arg8[%c4_39, %c0_40], %59 {strides = array<i32>} : memref<16x128xf32, #tpu.memory_space<vmem>>, vector<8x128xf32>,
    %cst_41 = arith.constant 0.000000e+00 : f32
    %64 = vector.broadcast %cst_41 : f32 to vector<9x128xf32>
    %c0_42 = arith.constant 0 : index
    %c0_43 = arith.constant 0 : index
    %65 = vector.load %arg8[%c0_42, %c0_43] : memref<16x128xf32, #tpu.memory_space<vmem>>, vector<9x128xf32>
    %66 = arith.truncf %65 : vector<9x128xf32> to vector<9x128xbf16>
    %c0_44 = arith.constant 0 : index
    %c0_45 = arith.constant 0 : index
    %c0_46 = arith.constant 0 : index
    %67 = vector.load %arg4[%c0_44, %c0_45, %c0_46] : memref<8x128x128xbf16, #tpu.memory_space<vmem>>, vector<1x128x128xbf16>
    %68 = vector.shape_cast %67 : vector<1x128x128xbf16> to vector<128x128xbf16>
    %cst_47 = arith.constant dense<0.000000e+00> : vector<9x128xf32>
    %69 = tpu.matmul %66, %68, %cst_47 {dimension_numbers = #tpu.dot_dimension_numbers<[1], [0], [0], [1], [0, 0, 1, 1], [], []>} : vector<9x128xbf16>, vector<128x128xbf16>, vector<9x128xf32> -> vector<9x128xf32>
    %70 = arith.addf %64, %69 : vector<9x128xf32>
    %c1_48 = arith.constant 1 : index
    %c0_49 = arith.constant 0 : index
    %71 = vector.load %arg8[%c1_48, %c0_49] : memref<16x128xf32, #tpu.memory_space<vmem>>, vector<9x128xf32>
    %72 = arith.truncf %71 : vector<9x128xf32> to vector<9x128xbf16>
    %c1_50 = arith.constant 1 : index
    %c0_51 = arith.constant 0 : index
    %c0_52 = arith.constant 0 : index
    %73 = vector.load %arg4[%c1_50, %c0_51, %c0_52] : memref<8x128x128xbf16, #tpu.memory_space<vmem>>, vector<1x128x128xbf16>
    %74 = vector.shape_cast %73 : vector<1x128x128xbf16> to vector<128x128xbf16>
    %cst_53 = arith.constant dense<0.000000e+00> : vector<9x128xf32>
    %75 = tpu.matmul %72, %74, %cst_53 {dimension_numbers = #tpu.dot_dimension_numbers<[1], [0], [0], [1], [0, 0, 1, 1], [], []>} : vector<9x128xbf16>, vector<128x128xbf16>, vector<9x128xf32> -> vector<9x128xf32>
    %76 = arith.addf %70, %75 : vector<9x128xf32>
    %c2_54 = arith.constant 2 : index
    %c0_55 = arith.constant 0 : index
    %77 = vector.load %arg8[%c2_54, %c0_55] : memref<16x128xf32, #tpu.memory_space<vmem>>, vector<9x128xf32>
    %78 = arith.truncf %77 : vector<9x128xf32> to vector<9x128xbf16>
    %c2_56 = arith.constant 2 : index
    %c0_57 = arith.constant 0 : index
    %c0_58 = arith.constant 0 : index
    %79 = vector.load %arg4[%c2_56, %c0_57, %c0_58] : memref<8x128x128xbf16, #tpu.memory_space<vmem>>, vector<1x128x128xbf16>
    %80 = vector.shape_cast %79 : vector<1x128x128xbf16> to vector<128x128xbf16>
    %cst_59 = arith.constant dense<0.000000e+00> : vector<9x128xf32>
    %81 = tpu.matmul %78, %80, %cst_59 {dimension_numbers = #tpu.dot_dimension_numbers<[1], [0], [0], [1], [0, 0, 1, 1], [], []>} : vector<9x128xbf16>, vector<128x128xbf16>, vector<9x128xf32> -> vector<9x128xf32>
    %82 = arith.addf %76, %81 : vector<9x128xf32>
    %c3_60 = arith.constant 3 : index
    %c0_61 = arith.constant 0 : index
    %83 = vector.load %arg8[%c3_60, %c0_61] : memref<16x128xf32, #tpu.memory_space<vmem>>, vector<9x128xf32>
    %84 = arith.truncf %83 : vector<9x128xf32> to vector<9x128xbf16>
    %c3_62 = arith.constant 3 : index
    %c0_63 = arith.constant 0 : index
    %c0_64 = arith.constant 0 : index
    %85 = vector.load %arg4[%c3_62, %c0_63, %c0_64] : memref<8x128x128xbf16, #tpu.memory_space<vmem>>, vector<1x128x128xbf16>
    %86 = vector.shape_cast %85 : vector<1x128x128xbf16> to vector<128x128xbf16>
    %cst_65 = arith.constant dense<0.000000e+00> : vector<9x128xf32>
    %87 = tpu.matmul %84, %86, %cst_65 {dimension_numbers = #tpu.dot_dimension_numbers<[1], [0], [0], [1], [0, 0, 1, 1], [], []>} : vector<9x128xbf16>, vector<128x128xbf16>, vector<9x128xf32> -> vector<9x128xf32>
    %88 = arith.addf %82, %87 : vector<9x128xf32>
    %c4_66 = arith.constant 4 : index
    %c0_67 = arith.constant 0 : index
    %89 = vector.load %arg8[%c4_66, %c0_67] : memref<16x128xf32, #tpu.memory_space<vmem>>, vector<9x128xf32>
    %90 = arith.truncf %89 : vector<9x128xf32> to vector<9x128xbf16>
    %c4_68 = arith.constant 4 : index
    %c0_69 = arith.constant 0 : index
    %c0_70 = arith.constant 0 : index
    %91 = vector.load %arg4[%c4_68, %c0_69, %c0_70] : memref<8x128x128xbf16, #tpu.memory_space<vmem>>, vector<1x128x128xbf16>
    %92 = vector.shape_cast %91 : vector<1x128x128xbf16> to vector<128x128xbf16>
    %cst_71 = arith.constant dense<0.000000e+00> : vector<9x128xf32>
    %93 = tpu.matmul %90, %92, %cst_71 {dimension_numbers = #tpu.dot_dimension_numbers<[1], [0], [0], [1], [0, 0, 1, 1], [], []>} : vector<9x128xbf16>, vector<128x128xbf16>, vector<9x128xf32> -> vector<9x128xf32>
    %94 = arith.addf %88, %93 : vector<9x128xf32>
    %c5_72 = arith.constant 5 : index
    %c0_73 = arith.constant 0 : index
    %95 = vector.load %arg8[%c5_72, %c0_73] : memref<16x128xf32, #tpu.memory_space<vmem>>, vector<9x128xf32>
    %96 = arith.truncf %95 : vector<9x128xf32> to vector<9x128xbf16>
    %c5_74 = arith.constant 5 : index
    %c0_75 = arith.constant 0 : index
    %c0_76 = arith.constant 0 : index
    %97 = vector.load %arg4[%c5_74, %c0_75, %c0_76] : memref<8x128x128xbf16, #tpu.memory_space<vmem>>, vector<1x128x128xbf16>
    %98 = vector.shape_cast %97 : vector<1x128x128xbf16> to vector<128x128xbf16>
    %cst_77 = arith.constant dense<0.000000e+00> : vector<9x128xf32>
    %99 = tpu.matmul %96, %98, %cst_77 {dimension_numbers = #tpu.dot_dimension_numbers<[1], [0], [0], [1], [0, 0, 1, 1], [], []>} : vector<9x128xbf16>, vector<128x128xbf16>, vector<9x128xf32> -> vector<9x128xf32>
    %100 = arith.addf %94, %99 : vector<9x128xf32>
    %c6_78 = arith.constant 6 : index
    %c0_79 = arith.constant 0 : index
    %101 = vector.load %arg8[%c6_78, %c0_79] : memref<16x128xf32, #tpu.memory_space<vmem>>, vector<9x128xf32>
    %102 = arith.truncf %101 : vector<9x128xf32> to vector<9x128xbf16>
    %c6_80 = arith.constant 6 : index
    %c0_81 = arith.constant 0 : index
    %c0_82 = arith.constant 0 : index
    %103 = vector.load %arg4[%c6_80, %c0_81, %c0_82] : memref<8x128x128xbf16, #tpu.memory_space<vmem>>, vector<1x128x128xbf16>
    %104 = vector.shape_cast %103 : vector<1x128x128xbf16> to vector<128x128xbf16>
    %cst_83 = arith.constant dense<0.000000e+00> : vector<9x128xf32>
    %105 = tpu.matmul %102, %104, %cst_83 {dimension_numbers = #tpu.dot_dimension_numbers<[1], [0], [0], [1], [0, 0, 1, 1], [], []>} : vector<9x128xbf16>, vector<128x128xbf16>, vector<9x128xf32> -> vector<9x128xf32>
    %106 = arith.addf %100, %105 : vector<9x128xf32>
    %c7_84 = arith.constant 7 : index
    %c0_85 = arith.constant 0 : index
    %107 = vector.load %arg8[%c7_84, %c0_85] : memref<16x128xf32, #tpu.memory_space<vmem>>, vector<9x128xf32>
    %108 = arith.truncf %107 : vector<9x128xf32> to vector<9x128xbf16>
    %c7_86 = arith.constant 7 : index
    %c0_87 = arith.constant 0 : index
    %c0_88 = arith.constant 0 : index
    %109 = vector.load %arg4[%c7_86, %c0_87, %c0_88] : memref<8x128x128xbf16, #tpu.memory_space<vmem>>, vector<1x128x128xbf16>
    %110 = vector.shape_cast %109 : vector<1x128x128xbf16> to vector<128x128xbf16>
    %cst_89 = arith.constant dense<0.000000e+00> : vector<9x128xf32>
    %111 = tpu.matmul %108, %110, %cst_89 {dimension_numbers = #tpu.dot_dimension_numbers<[1], [0], [0], [1], [0, 0, 1, 1], [], []>} : vector<9x128xbf16>, vector<128x128xbf16>, vector<9x128xf32> -> vector<9x128xf32>
    %112 = arith.addf %106, %111 : vector<9x128xf32>
    %c0_90 = arith.constant 0 : index
    %c0_91 = arith.constant 0 : index
    %c0_92 = arith.constant 0 : index
    %113 = vector.load %arg2[%c0_90, %c0_91, %c0_92] : memref<1x9x4xbf16, #tpu.memory_space<vmem>>, vector<1x9x4xbf16>
    %114 = vector.shape_cast %113 : vector<1x9x4xbf16> to vector<9x4xbf16>
    %c0_93 = arith.constant 0 : index
    %c0_94 = arith.constant 0 : index
    %115 = vector.load %arg5[%c0_93, %c0_94] : memref<4x128xbf16, #tpu.memory_space<vmem>>, vector<4x128xbf16>
    %cst_95 = arith.constant dense<0.000000e+00> : vector<9x128xf32>
    %116 = tpu.matmul %114, %115, %cst_95 {dimension_numbers = #tpu.dot_dimension_numbers<[1], [0], [0], [1], [0, 0, 1, 1], [], []>} : vector<9x4xbf16>, vector<4x128xbf16>, vector<9x128xf32> -> vector<9x128xf32>
    %117 = arith.addf %112, %116 : vector<9x128xf32>
    %118 = vector.broadcast %4 : vector<1x128xf32> to vector<9x128xf32>
    %119 = arith.addf %117, %118 : vector<9x128xf32>
    %cst_96 = arith.constant 0.000000e+00 : f32
    %120 = vector.broadcast %cst_96 : f32 to vector<9x128xf32>
    %121 = arith.maximumf %119, %120 : vector<9x128xf32>
    %122 = vector.broadcast %5 : vector<1x128xf32> to vector<9x128xf32>
    %123 = arith.mulf %121, %122 : vector<9x128xf32>
    %124 = vector.broadcast %6 : vector<1x128xf32> to vector<9x128xf32>
    %125 = arith.addf %123, %124 : vector<9x128xf32>
    %c0_97 = arith.constant 0 : index
    %c0_98 = arith.constant 0 : index
    %c0_99 = arith.constant 0 : index
    %126 = vector.load %arg7[%c0_97, %c0_98, %c0_99] : memref<1x9x128xf32, #tpu.memory_space<vmem>>, vector<1x9x128xf32>
    %127 = vector.shape_cast %126 : vector<1x9x128xf32> to vector<9x128xf32>
    %128 = vector.shape_cast %125 : vector<9x128xf32> to vector<1x9x128xf32>
    tpu.vector_store %arg7[%c0_97, %c0_98, %c0_99], %128 {strides = array<i32>} : memref<1x9x128xf32, #tpu.memory_space<vmem>>, vector<1x9x128xf32>,
    return
  }
  func.func @transform_0(%arg0: i32) -> (i32, i32, i32, i32) {
    %c0_i32 = arith.constant 0 : i32
    %c0_i32_0 = arith.constant 0 : i32
    %c0_i32_1 = arith.constant 0 : i32
    %c0_i32_2 = arith.constant 0 : i32
    return %arg0, %c0_i32, %c0_i32_0, %c0_i32_1 : i32, i32, i32, i32
  }
  func.func @transform_1(%arg0: i32) -> (i32, i32, i32) {
    %c0_i32 = arith.constant 0 : i32
    %c0_i32_0 = arith.constant 0 : i32
    %c0_i32_1 = arith.constant 0 : i32
    return %arg0, %c0_i32, %c0_i32_0 : i32, i32, i32
  }
  func.func @transform_2(%arg0: i32) -> (i32, i32, i32) {
    %c0_i32 = arith.constant 0 : i32
    %c0_i32_0 = arith.constant 0 : i32
    %c0_i32_1 = arith.constant 0 : i32
    %c0_i32_2 = arith.constant 0 : i32
    return %c0_i32, %c0_i32_0, %c0_i32_1 : i32, i32, i32
  }
  func.func @transform_3(%arg0: i32) -> (i32, i32, i32) {
    %c0_i32 = arith.constant 0 : i32
    %c0_i32_0 = arith.constant 0 : i32
    %c0_i32_1 = arith.constant 0 : i32
    %c0_i32_2 = arith.constant 0 : i32
    return %c0_i32, %c0_i32_0, %c0_i32_1 : i32, i32, i32
  }
  func.func @transform_4(%arg0: i32) -> (i32, i32) {
    %c0_i32 = arith.constant 0 : i32
    %c0_i32_0 = arith.constant 0 : i32
    %c0_i32_1 = arith.constant 0 : i32
    return %c0_i32, %c0_i32_0 : i32, i32
  }
  func.func @transform_5(%arg0: i32) -> (i32, i32) {
    %c0_i32 = arith.constant 0 : i32
    %c0_i32_0 = arith.constant 0 : i32
    %c0_i32_1 = arith.constant 0 : i32
    return %c0_i32, %c0_i32_0 : i32, i32
  }
  func.func @transform_6(%arg0: i32) -> (i32, i32, i32) {
    %c0_i32 = arith.constant 0 : i32
    %c0_i32_0 = arith.constant 0 : i32
    %c0_i32_1 = arith.constant 0 : i32
    return %arg0, %c0_i32, %c0_i32_0 : i32, i32, i32
  }
}

</mosaic_0001>

<llo_original>
// kernel: residual_block_forward.1
$region0: #{residual_block_forward.1}
  #allocation0 [shape = 'u32[]', space=smem, size = 0x4, offset = 0x4, fixed_abs, tag = 'smem constant byte address 0x4 - core index']
  #allocation1 [shape = 'u32[144,128]{1,0:T(1,128)}', space=vmem, size = 0x12000, scoped, tag = 'internal scratch']
  #allocation2 [shape = 'f32[16,128]{1,0:T(8,128)}', space=vmem, size = 0x2000, scoped, tag = 'scratch operand']
  %s0 = inlined_call_operand.vmem [shape: bf16[2,2,12,4], index: 0, kind: input, shape index: {}]
  %s1 = inlined_call_operand.vmem [shape: bf16[2,9,4], index: 1, kind: input, shape index: {}]
  %s2 = inlined_call_operand.vmem [shape: bf16[8,4,128], index: 2, kind: input, shape index: {}]
  %s3 = inlined_call_operand.vmem [shape: bf16[8,128,128], index: 3, kind: input, shape index: {}]
  %s4 = inlined_call_operand.vmem [shape: bf16[4,128], index: 4, kind: input, shape index: {}]
  %s5 = inlined_call_operand.vmem [shape: f32[6,128], index: 5, kind: input, shape index: {}]
  %s6 = inlined_call_operand.vmem [shape: f32[2,9,128], index: 6, kind: output, shape index: {}]
  %s7 = sld [smem:[#allocation0]]
  $region57: #{residual_block_forward.1} parent=0
    _
  %s9 = ssub.s32 1, %s7
  %s10 = scalar_select 0, %s9, %s7
  loop: start=0, step=1, limit=4
  $region2: #{residual_block_forward.1} parent=0 // loop_pre_header
    _
  $region3: #{residual_block_forward.1} parent=0 // loop_header
    %s12 = sphi 0, %s16
    %p13 = scmp.ge.s32.totalorder %s12, 4
    %s22 = sphi 0, %s24
    %s25 = sphi 0, %s22
    %s26 = sphi 0, %s25
    %s42 = sphi 0, %s26
    %s48 = sphi 0, %s50
    %s51 = sphi 0, %s48
    %s52 = sphi 0, %s51
    %s68 = sphi 0, %s52
    %s72 = sphi 0, %s72
    %s74 = sphi 0, %s72
    %s75 = sphi 0, %s74
    %s89 = sphi 0, %s75
    %s93 = sphi 0, %s93
    %s95 = sphi 0, %s93
    %s96 = sphi 0, %s95
    %s110 = sphi 0, %s96
    %s114 = sphi 0, %s114
    %s116 = sphi 0, %s114
    %s117 = sphi 0, %s116
    %s131 = sphi 0, %s117
    %s135 = sphi 0, %s135
    %s137 = sphi 0, %s135
    %s138 = sphi 0, %s137
    %s152 = sphi 0, %s138
    %s158 = sphi 0, %s160
    %s161 = sphi 0, %s158
    %s162 = sphi 0, %s161
    %s178 = sphi 0, %s162
  $region4: #{residual_block_forward.1} parent=0 // loop_header_branch
    %15 = sbr.rel (%p13) target = $region8
  $region5: #{residual_block_forward.1} parent=0 // loop_body
    %s17 = ssub.s32 %s12, 1
    %s18 = ssub.s32 %s12, 2
    %s19 = sadd.s32 %s12, 1
    %s20 = ssub.s32 %s12, %s19
    %p21 = scmp.eq.s32.totalorder %s20, 0
    %s23 = sadd.s32 %s22, 1
    %s24 = scalar_select %p21, %s22, %s23
    %p27 = pneg %p21
    %p28 = scmp.eq.s32.totalorder %s12, 1
    %p29 = por %p27, %p28
    %p30 = scmp.ne.s32.totalorder %s22, %s25
    %p31 = scmp.eq.s32.totalorder %s12, 0
    %p32 = por %p30, %p31
    %p33 = scmp.ne.s32.totalorder %s22, %s25
    %p34 = scmp.eq.s32.totalorder %s17, 1
    %p35 = por %p33, %p34
    %p36 = scmp.ne.s32.totalorder %s25, %s26
    %p37 = scmp.eq.s32.totalorder %s17, 0
    %p38 = por %p36, %p37
    %p39 = scmp.ne.s32.totalorder %s25, %s26
    %p40 = scmp.eq.s32.totalorder %s18, 1
    %p41 = por %p39, %p40
    %p43 = scmp.ne.s32.totalorder %s26, %s42
    %p44 = scmp.eq.s32.totalorder %s18, 0
    %p45 = por %p43, %p44
    %s46 = ssub.s32 %s12, %s19
    %p47 = scmp.eq.s32.totalorder %s46, 0
    %s49 = sadd.s32 %s48, 1
    %s50 = scalar_select %p47, %s48, %s49
    %p53 = pneg %p47
    %p54 = scmp.eq.s32.totalorder %s12, 1
    %p55 = por %p53, %p54
    %p56 = scmp.ne.s32.totalorder %s48, %s51
    %p57 = scmp.eq.s32.totalorder %s12, 0
    %p58 = por %p56, %p57
    %p59 = scmp.ne.s32.totalorder %s48, %s51
    %p60 = scmp.eq.s32.totalorder %s17, 1
    %p61 = por %p59, %p60
    %p62 = scmp.ne.s32.totalorder %s51, %s52
    %p63 = scmp.eq.s32.totalorder %s17, 0
    %p64 = por %p62, %p63
    %p65 = scmp.ne.s32.totalorder %s51, %s52
    %p66 = scmp.eq.s32.totalorder %s18, 1
    %p67 = por %p65, %p66
    %p69 = scmp.ne.s32.totalorder %s52, %s68
    %p70 = scmp.eq.s32.totalorder %s18, 0
    %p71 = por %p69, %p70
    %s73 = sadd.s32 %s72, 1
    %p76 = scmp.eq.s32.totalorder %s12, 1
    %p77 = scmp.ne.s32.totalorder %s72, %s74
    %p78 = scmp.eq.s32.totalorder %s12, 0
    %p79 = por %p77, %p78
    %p80 = scmp.ne.s32.totalorder %s72, %s74
    %p81 = scmp.eq.s32.totalorder %s17, 1
    %p82 = por %p80, %p81
    %p83 = scmp.ne.s32.totalorder %s74, %s75
    %p84 = scmp.eq.s32.totalorder %s17, 0
    %p85 = por %p83, %p84
    %p86 = scmp.ne.s32.totalorder %s74, %s75
    %p87 = scmp.eq.s32.totalorder %s18, 1
    %p88 = por %p86, %p87
    %p90 = scmp.ne.s32.totalorder %s75, %s89
    %p91 = scmp.eq.s32.totalorder %s18, 0
    %p92 = por %p90, %p91
    %s94 = sadd.s32 %s93, 1
    %p97 = scmp.eq.s32.totalorder %s12, 1
    %p98 = scmp.ne.s32.totalorder %s93, %s95
    %p99 = scmp.eq.s32.totalorder %s12, 0
    %p100 = por %p98, %p99
    %p101 = scmp.ne.s32.totalorder %s93, %s95
    %p102 = scmp.eq.s32.totalorder %s17, 1
    %p103 = por %p101, %p102
    %p104 = scmp.ne.s32.totalorder %s95, %s96
    %p105 = scmp.eq.s32.totalorder %s17, 0
    %p106 = por %p104, %p105
    %p107 = scmp.ne.s32.totalorder %s95, %s96
    %p108 = scmp.eq.s32.totalorder %s18, 1
    %p109 = por %p107, %p108
    %p111 = scmp.ne.s32.totalorder %s96, %s110
    %p112 = scmp.eq.s32.totalorder %s18, 0
    %p113 = por %p111, %p112
    %s115 = sadd.s32 %s114, 1
    %p118 = scmp.eq.s32.totalorder %s12, 1
    %p119 = scmp.ne.s32.totalorder %s114, %s116
    %p120 = scmp.eq.s32.totalorder %s12, 0
    %p121 = por %p119, %p120
    %p122 = scmp.ne.s32.totalorder %s114, %s116
    %p123 = scmp.eq.s32.totalorder %s17, 1
    %p124 = por %p122, %p123
    %p125 = scmp.ne.s32.totalorder %s116, %s117
    %p126 = scmp.eq.s32.totalorder %s17, 0
    %p127 = por %p125, %p126
    %p128 = scmp.ne.s32.totalorder %s116, %s117
    %p129 = scmp.eq.s32.totalorder %s18, 1
    %p130 = por %p128, %p129
    %p132 = scmp.ne.s32.totalorder %s117, %s131
    %p133 = scmp.eq.s32.totalorder %s18, 0
    %p134 = por %p132, %p133
    %s136 = sadd.s32 %s135, 1
    %p139 = scmp.eq.s32.totalorder %s12, 1
    %p140 = scmp.ne.s32.totalorder %s135, %s137
    %p141 = scmp.eq.s32.totalorder %s12, 0
    %p142 = por %p140, %p141
    %p143 = scmp.ne.s32.totalorder %s135, %s137
    %p144 = scmp.eq.s32.totalorder %s17, 1
    %p145 = por %p143, %p144
    %p146 = scmp.ne.s32.totalorder %s137, %s138
    %p147 = scmp.eq.s32.totalorder %s17, 0
    %p148 = por %p146, %p147
    %p149 = scmp.ne.s32.totalorder %s137, %s138
    %p150 = scmp.eq.s32.totalorder %s18, 1
    %p151 = por %p149, %p150
    %p153 = scmp.ne.s32.totalorder %s138, %s152
    %p154 = scmp.eq.s32.totalorder %s18, 0
    %p155 = por %p153, %p154
    %s156 = ssub.s32 %s12, %s19
    %p157 = scmp.eq.s32.totalorder %s156, 0
    %s159 = sadd.s32 %s158, 1
    %s160 = scalar_select %p157, %s158, %s159
    %p163 = pneg %p157
    %p164 = scmp.eq.s32.totalorder %s12, 1
    %p165 = por %p163, %p164
    %p166 = scmp.ne.s32.totalorder %s158, %s161
    %p167 = scmp.eq.s32.totalorder %s12, 0
    %p168 = por %p166, %p167
    %p169 = scmp.ne.s32.totalorder %s158, %s161
    %p170 = scmp.eq.s32.totalorder %s17, 1
    %p171 = por %p169, %p170
    %p172 = scmp.ne.s32.totalorder %s161, %s162
    %p173 = scmp.eq.s32.totalorder %s17, 0
    %p174 = por %p172, %p173
    %p175 = scmp.ne.s32.totalorder %s161, %s162
    %p176 = scmp.eq.s32.totalorder %s18, 1
    %p177 = por %p175, %p176
    %p179 = scmp.ne.s32.totalorder %s162, %s178
    %p180 = scmp.eq.s32.totalorder %s18, 0
    %p181 = por %p179, %p180
    %p182 = scmp.le.s32.totalorder 1, %s12
    %p183 = scmp.lt.s32.totalorder %s12, 3
    %p184 = pnand %p182, %p183
    %p185 = pneg %p184
    // Predicated region
    $region9: #{residual_block_forward.1} parent=5 // pred_check
      _
    $region10: #{residual_block_forward.1} parent=5 // pred_check_branch
      %187 = sbr.rel (%p184) target = $region12
    $region11: #{residual_block_forward.1} parent=5 // pred_region
      %s188 = ssub.s32 %s12, 1
      // Predicated region
      $region13: #{residual_block_forward.1} parent=11 // pred_check
        %p189 = pneg %p85
      $region14: #{residual_block_forward.1} parent=11 // pred_check_branch
        %191 = sbr.rel (%p189) target = $region16
      $region15: #{residual_block_forward.1} parent=11 // pred_region
        _
      $region16: #{residual_block_forward.1} parent=11 // pred_fallthru
        _
      // Predicated region
      $region17: #{residual_block_forward.1} parent=11 // pred_check
        %p192 = pneg %p106
      $region18: #{residual_block_forward.1} parent=11 // pred_check_branch
        %194 = sbr.rel (%p192) target = $region20
      $region19: #{residual_block_forward.1} parent=11 // pred_region
        _
      $region20: #{residual_block_forward.1} parent=11 // pred_fallthru
        _
      // Predicated region
      $region21: #{residual_block_forward.1} parent=11 // pred_check
        %p195 = pneg %p127
      $region22: #{residual_block_forward.1} parent=11 // pred_check_branch
        %197 = sbr.rel (%p195) target = $region24
      $region23: #{residual_block_forward.1} parent=11 // pred_region
        _
      $region24: #{residual_block_forward.1} parent=11 // pred_fallthru
        _
      // Predicated region
      $region25: #{residual_block_forward.1} parent=11 // pred_check
        %p198 = pneg %p148
      $region26: #{residual_block_forward.1} parent=11 // pred_check_branch
        %200 = sbr.rel (%p198) target = $region28
      $region27: #{residual_block_forward.1} parent=11 // pred_region
        _
      $region28: #{residual_block_forward.1} parent=11 // pred_fallthru
        _
    $region12: #{residual_block_forward.1} parent=5 // pred_fallthru
      _
    %p201 = scmp.lt.s32.totalorder %s12, 2
    // Predicated region
    $region29: #{residual_block_forward.1} parent=5 // pred_check
      %p202 = pneg %p201
    $region30: #{residual_block_forward.1} parent=5 // pred_check_branch
      %204 = sbr.rel (%p202) target = $region32
    $region31: #{residual_block_forward.1} parent=5 // pred_region
      // Predicated region
      $region33: #{residual_block_forward.1} parent=31 // pred_check
        %p205 = pneg %p32
      $region34: #{residual_block_forward.1} parent=31 // pred_check_branch
        %207 = sbr.rel (%p205) target = $region36
      $region35: #{residual_block_forward.1} parent=31 // pred_region
        %p208 = scmp.lt.s32.totalorder %s12, 1
        %s209 = scalar_select %p208, %s12, 1
        %s210 = smul.addr %s209, 4
        %s211 = smul.addr %s210, 4
        %s212 = scalar_lea.vmem %s0, %s211
      $region36: #{residual_block_forward.1} parent=31 // pred_fallthru
        _
      // Predicated region
      $region37: #{residual_block_forward.1} parent=31 // pred_check
        %p213 = pneg %p58
      $region38: #{residual_block_forward.1} parent=31 // pred_check_branch
        %215 = sbr.rel (%p213) target = $region40
      $region39: #{residual_block_forward.1} parent=31 // pred_region
        %p216 = scmp.lt.s32.totalorder %s12, 1
        %s217 = scalar_select %p216, %s12, 1
        %s218 = smul.addr %s217, 2
        %s219 = smul.addr %s218, 4
        %s220 = scalar_lea.vmem %s1, %s219
      $region40: #{residual_block_forward.1} parent=31 // pred_fallthru
        _
    $region32: #{residual_block_forward.1} parent=5 // pred_fallthru
      _
    %p221 = scmp.le.s32.totalorder 1, %s12
    %p222 = scmp.lt.s32.totalorder %s12, 3
    %p223 = pnand %p221, %p222
    %p224 = pneg %p223
    // Predicated region
    $region41: #{residual_block_forward.1} parent=5 // pred_check
      _
    $region42: #{residual_block_forward.1} parent=5 // pred_check_branch
      %226 = sbr.rel (%p223) target = $region44
    $region43: #{residual_block_forward.1} parent=5 // pred_region
      %s227 = ssub.s32 %s12, 1
      %p228 = scmp.lt.s32.totalorder %s17, 1
      %s229 = scalar_select %p228, %s17, 1
      %s230 = smul.addr %s229, 4
      %s231 = smul.addr %s230, 4
      %s232 = scalar_lea.vmem %s0, %s231
      %p233 = pneg %p38
      %p234 = pneg %p35
      %p235 = scmp.lt.s32.totalorder %s17, 1
      %s236 = scalar_select %p235, %s17, 1
      %s237 = smul.addr %s236, 2
      %s238 = smul.addr %s237, 4
      %s239 = scalar_lea.vmem %s1, %s238
      %p240 = pneg %p64
      %p241 = pneg %p61
      %p242 = pneg %p85
      %p243 = pneg %p82
      %p244 = pneg %p106
      %p245 = pneg %p103
      %p246 = pneg %p127
      %p247 = pneg %p124
      %p248 = pneg %p148
      %p249 = pneg %p145
      %p250 = pneg %p174
      %p251 = pneg %p171
      %p252 = scmp.lt.s32.totalorder %s17, 1
      %s253 = scalar_select %p252, %s17, 1
      %s254 = smul.addr %s253, 2
      %s255 = smul.addr %s254, 8
      %s256 = scalar_lea.vmem %s6, %s255
      %p257 = scmp.lt.s32.totalorder %s17, 1
      %s258 = scalar_select %p257, %s17, 1
      %s259 = smul.addr %s258, 4
      %s260 = smul.addr %s259, 4
      %s261 = scalar_lea.vmem %s0, %s260
      %p262 = scmp.lt.s32.totalorder %s17, 1
      %s263 = scalar_select %p262, %s17, 1
      %s264 = smul.addr %s263, 2
      %s265 = smul.addr %s264, 4
      %s266 = scalar_lea.vmem %s1, %s265
      %p267 = scmp.lt.s32.totalorder %s17, 1
      %s268 = scalar_select %p267, %s17, 1
      %s269 = smul.addr %s268, 2
      %s270 = smul.addr %s269, 8
      %s271 = scalar_lea.vmem %s6, %s270
      %v273 = vld [vmem:[%s5] sm:$0x3f]
      %v274 = vld [vmem:[%s261] sm:$0xf]
      %v275 = vld [vmem:[%s261 + $0x4] sm:$0x3]
      %s276 = scalar_lea.vmem %s261, 8
      %v277 = vld [vmem:[%s276] sm:$0xf]
      %v278 = vld [vmem:[%s276 + $0x4] sm:$0x3]
      %v279 = vld [vmem:[%s2] sm:$0x3]
      %s280 = scalar_lea.vmem %s2, 2
      %v281 = vld [vmem:[%s280] sm:$0x3]
      %vm282 = vcmask 31744
      %v284 = vsel %vm282, %v277, 0
      %vm286 = vcmask 1041408
      %v288 = vsel %vm286, %v281, 0
      %290 = vmatprep.subr.bf16.mxu0 0
      %291 = vmatpush1.bf16.msra.mxu0 0
      %292 = vmatprep.subr.bf16.mxu0 0
      %293 = vmatpush1.bf16.msra.mxu0 0
      %294 = vmatprep.subr.bf16.mxu0 0
      %295 = vmatpush1.bf16.msra.mxu0 0
      %296 = vmatprep.subr.bf16.mxu0 0
      %297 = vmatpush1.bf16.msra.mxu0 0
      %298 = vmatprep.subr.bf16.mxu0 0
      %299 = vmatpush1.bf16.msra.mxu0 0
      %300 = vmatprep.subr.bf16.mxu0 0
      %301 = vmatpush1.bf16.msra.mxu0 0
      %302 = vmatprep.subr.bf16.mxu0 0
      %303 = vmatpush1.bf16.msra.mxu0 0
      %304 = vmatprep.subr.bf16.mxu0 0
      %305 = vmatpush1.bf16.msra.mxu0 %v288
      %306 = vmatprep.subr.bf16.mxu0 0
      %307 = vmatpush2.bf16.msra.mxu0 0
      %308 = vmatprep.subr.bf16.mxu0 0
      %309 = vmatpush2.bf16.msra.mxu0 0
      %310 = vmatprep.subr.bf16.mxu0 0
      %311 = vmatpush2.bf16.msra.mxu0 0
      %312 = vmatprep.subr.bf16.mxu0 0
      %313 = vmatpush2.bf16.msra.mxu0 0
      %314 = vmatprep.subr.bf16.mxu0 0
      %315 = vmatpush2.bf16.msra.mxu0 0
      %316 = vmatprep.subr.bf16.mxu0 0
      %317 = vmatpush2.bf16.msra.mxu0 0
      %318 = vmatprep.subr.bf16.mxu0 0
      %319 = vmatpush2.bf16.msra.mxu0 0
      %320 = vmatprep.subr.bf16.mxu0 0
      %321 = vmatpush2.bf16.msra.mxu0 0
      %322 = vmatprep.mubr.bf16.mxu0 0
      %323 = vmatmul.mubr.bf16.gmra.mxu0 %v284
      %v324 = vpop.f32.mrf.mxu0
      %v325 = vadd.f32 0.0, %v324
      %v326 = vpop.f32.mrf.mxu0
      %v327 = vpop.f32.mrf.mxu0
      %v328 = vpop.f32.mrf.mxu0
      %329 = vdwg.mxu0
      %v331 = vsel %vm282, %v274, 0
      %v334 = vsel %vm286, %v279, 0
      %336 = vmatprep.subr.bf16.mxu0 0
      %337 = vmatpush1.bf16.msra.mxu0 0
      %338 = vmatprep.subr.bf16.mxu0 0
      %339 = vmatpush1.bf16.msra.mxu0 0
      %340 = vmatprep.subr.bf16.mxu0 0
      %341 = vmatpush1.bf16.msra.mxu0 0
      %342 = vmatprep.subr.bf16.mxu0 0
      %343 = vmatpush1.bf16.msra.mxu0 0
      %344 = vmatprep.subr.bf16.mxu0 0
      %345 = vmatpush1.bf16.msra.mxu0 0
      %346 = vmatprep.subr.bf16.mxu0 0
      %347 = vmatpush1.bf16.msra.mxu0 0
      %348 = vmatprep.subr.bf16.mxu0 0
      %349 = vmatpush1.bf16.msra.mxu0 0
      %350 = vmatprep.subr.bf16.mxu0 0
      %351 = vmatpush1.bf16.msra.mxu0 %v334
      %352 = vmatprep.subr.bf16.mxu0 0
      %353 = vmatpush2.bf16.msra.mxu0 0
      %354 = vmatprep.subr.bf16.mxu0 0
      %355 = vmatpush2.bf16.msra.mxu0 0
      %356 = vmatprep.subr.bf16.mxu0 0
      %357 = vmatpush2.bf16.msra.mxu0 0
      %358 = vmatprep.subr.bf16.mxu0 0
      %359 = vmatpush2.bf16.msra.mxu0 0
      %360 = vmatprep.subr.bf16.mxu0 0
      %361 = vmatpush2.bf16.msra.mxu0 0
      %362 = vmatprep.subr.bf16.mxu0 0
      %363 = vmatpush2.bf16.msra.mxu0 0
      %364 = vmatprep.subr.bf16.mxu0 0
      %365 = vmatpush2.bf16.msra.mxu0 0
      %366 = vmatprep.subr.bf16.mxu0 0
      %367 = vmatpush2.bf16.msra.mxu0 0
      %368 = vmatprep.mubr.bf16.mxu0 0
      %369 = vmatmul.mubr.bf16.gmra.mxu0 %v331
      %v370 = vpop.f32.mrf.mxu0
      %v371 = vadd.f32 %v325, %v370
      %v372 = vpop.f32.mrf.mxu0
      %v373 = vpop.f32.mrf.mxu0
      %v374 = vpop.f32.mrf.mxu0
      %375 = vdwg.mxu0
      %s376 = scalar_lea.vmem %s2, 4
      %v377 = vld [vmem:[%s376] sm:$0x3]
      %v380 = vunpack.c.l.b16 %v274
      %v381 = vunpack.c.l.b16 %v275
      %v382 = vpack.c.b16 %v381, %v380
      %v384 = vshrl.u32 %v382, 16
      %v386 = vshll.u32 %v382, 16
      %v388 = vrot.slane %v386, 1
      %v389 = vor.u32 %v384, %v388
      %v391 = vsel %vm282, %v389, 0
      %v394 = vsel %vm286, %v377, 0
      %396 = vmatprep.subr.bf16.mxu0 0
      %397 = vmatpush1.bf16.msra.mxu0 0
      %398 = vmatprep.subr.bf16.mxu0 0
      %399 = vmatpush1.bf16.msra.mxu0 0
      %400 = vmatprep.subr.bf16.mxu0 0
      %401 = vmatpush1.bf16.msra.mxu0 0
      %402 = vmatprep.subr.bf16.mxu0 0
      %403 = vmatpush1.bf16.msra.mxu0 0
      %404 = vmatprep.subr.bf16.mxu0 0
      %405 = vmatpush1.bf16.msra.mxu0 0
      %406 = vmatprep.subr.bf16.mxu0 0
      %407 = vmatpush1.bf16.msra.mxu0 0
      %408 = vmatprep.subr.bf16.mxu0 0
      %409 = vmatpush1.bf16.msra.mxu0 0
      %410 = vmatprep.subr.bf16.mxu0 0
      %411 = vmatpush1.bf16.msra.mxu0 %v394
      %412 = vmatprep.subr.bf16.mxu0 0
      %413 = vmatpush2.bf16.msra.mxu0 0
      %414 = vmatprep.subr.bf16.mxu0 0
      %415 = vmatpush2.bf16.msra.mxu0 0
      %416 = vmatprep.subr.bf16.mxu0 0
      %417 = vmatpush2.bf16.msra.mxu0 0
      %418 = vmatprep.subr.bf16.mxu0 0
      %419 = vmatpush2.bf16.msra.mxu0 0
      %420 = vmatprep.subr.bf16.mxu0 0
      %421 = vmatpush2.bf16.msra.mxu0 0
      %422 = vmatprep.subr.bf16.mxu0 0
      %423 = vmatpush2.bf16.msra.mxu0 0
      %424 = vmatprep.subr.bf16.mxu0 0
      %425 = vmatpush2.bf16.msra.mxu0 0
      %426 = vmatprep.subr.bf16.mxu0 0
      %427 = vmatpush2.bf16.msra.mxu0 0
      %428 = vmatprep.mubr.bf16.mxu0 0
      %429 = vmatmul.mubr.bf16.gmra.mxu0 %v391
      %v430 = vpop.f32.mrf.mxu0
      %v431 = vadd.f32 0.0, %v430
      %v432 = vpop.f32.mrf.mxu0
      %v433 = vpop.f32.mrf.mxu0
      %v434 = vpop.f32.mrf.mxu0
      %435 = vdwg.mxu0
      %v436 = vadd.f32 %v371, %v431
      %s437 = scalar_lea.vmem %s2, 6
      %v438 = vld [vmem:[%s437] sm:$0x3]
      %v441 = vunpack.c.l.b16 %v277
      %v442 = vunpack.c.l.b16 %v278
      %v443 = vpack.c.b16 %v442, %v441
      %v445 = vshrl.u32 %v443, 16
      %v447 = vshll.u32 %v443, 16
      %v449 = vrot.slane %v447, 1
      %v450 = vor.u32 %v445, %v449
      %v452 = vsel %vm282, %v450, 0
      %v455 = vsel %vm286, %v438, 0
      %457 = vmatprep.subr.bf16.mxu0 0
      %458 = vmatpush1.bf16.msra.mxu0 0
      %459 = vmatprep.subr.bf16.mxu0 0
      %460 = vmatpush1.bf16.msra.mxu0 0
      %461 = vmatprep.subr.bf16.mxu0 0
      %462 = vmatpush1.bf16.msra.mxu0 0
      %463 = vmatprep.subr.bf16.mxu0 0
      %464 = vmatpush1.bf16.msra.mxu0 0
      %465 = vmatprep.subr.bf16.mxu0 0
      %466 = vmatpush1.bf16.msra.mxu0 0
      %467 = vmatprep.subr.bf16.mxu0 0
      %468 = vmatpush1.bf16.msra.mxu0 0
      %469 = vmatprep.subr.bf16.mxu0 0
      %470 = vmatpush1.bf16.msra.mxu0 0
      %471 = vmatprep.subr.bf16.mxu0 0
      %472 = vmatpush1.bf16.msra.mxu0 %v455
      %473 = vmatprep.subr.bf16.mxu0 0
      %474 = vmatpush2.bf16.msra.mxu0 0
      %475 = vmatprep.subr.bf16.mxu0 0
      %476 = vmatpush2.bf16.msra.mxu0 0
      %477 = vmatprep.subr.bf16.mxu0 0
      %478 = vmatpush2.bf16.msra.mxu0 0
      %479 = vmatprep.subr.bf16.mxu0 0
      %480 = vmatpush2.bf16.msra.mxu0 0
      %481 = vmatprep.subr.bf16.mxu0 0
      %482 = vmatpush2.bf16.msra.mxu0 0
      %483 = vmatprep.subr.bf16.mxu0 0
      %484 = vmatpush2.bf16.msra.mxu0 0
      %485 = vmatprep.subr.bf16.mxu0 0
      %486 = vmatpush2.bf16.msra.mxu0 0
      %487 = vmatprep.subr.bf16.mxu0 0
      %488 = vmatpush2.bf16.msra.mxu0 0
      %489 = vmatprep.mubr.bf16.mxu0 0
      %490 = vmatmul.mubr.bf16.gmra.mxu0 %v452
      %v491 = vpop.f32.mrf.mxu0
      %v492 = vadd.f32 0.0, %v491
      %v493 = vpop.f32.mrf.mxu0
      %v494 = vpop.f32.mrf.mxu0
      %v495 = vpop.f32.mrf.mxu0
      %496 = vdwg.mxu0
      %v497 = vadd.f32 %v436, %v492
      %s498 = scalar_lea.vmem %s2, 8
      %v499 = vld [vmem:[%s498] sm:$0x3]
      %v500 = vrot.slane %v382, 1
      %v502 = vsel %vm282, %v500, 0
      %v505 = vsel %vm286, %v499, 0
      %507 = vmatprep.subr.bf16.mxu0 0
      %508 = vmatpush1.bf16.msra.mxu0 0
      %509 = vmatprep.subr.bf16.mxu0 0
      %510 = vmatpush1.bf16.msra.mxu0 0
      %511 = vmatprep.subr.bf16.mxu0 0
      %512 = vmatpush1.bf16.msra.mxu0 0
      %513 = vmatprep.subr.bf16.mxu0 0
      %514 = vmatpush1.bf16.msra.mxu0 0
      %515 = vmatprep.subr.bf16.mxu0 0
      %516 = vmatpush1.bf16.msra.mxu0 0
      %517 = vmatprep.subr.bf16.mxu0 0
      %518 = vmatpush1.bf16.msra.mxu0 0
      %519 = vmatprep.subr.bf16.mxu0 0
      %520 = vmatpush1.bf16.msra.mxu0 0
      %521 = vmatprep.subr.bf16.mxu0 0
      %522 = vmatpush1.bf16.msra.mxu0 %v505
      %523 = vmatprep.subr.bf16.mxu0 0
      %524 = vmatpush2.bf16.msra.mxu0 0
      %525 = vmatprep.subr.bf16.mxu0 0
      %526 = vmatpush2.bf16.msra.mxu0 0
      %527 = vmatprep.subr.bf16.mxu0 0
      %528 = vmatpush2.bf16.msra.mxu0 0
      %529 = vmatprep.subr.bf16.mxu0 0
      %530 = vmatpush2.bf16.msra.mxu0 0
      %531 = vmatprep.subr.bf16.mxu0 0
      %532 = vmatpush2.bf16.msra.mxu0 0
      %533 = vmatprep.subr.bf16.mxu0 0
      %534 = vmatpush2.bf16.msra.mxu0 0
      %535 = vmatprep.subr.bf16.mxu0 0
      %536 = vmatpush2.bf16.msra.mxu0 0
      %537 = vmatprep.subr.bf16.mxu0 0
      %538 = vmatpush2.bf16.msra.mxu0 0
      %539 = vmatprep.mubr.bf16.mxu0 0
      %540 = vmatmul.mubr.bf16.gmra.mxu0 %v502
      %v541 = vpop.f32.mrf.mxu0
      %v542 = vadd.f32 0.0, %v541
      %v543 = vpop.f32.mrf.mxu0
      %v544 = vpop.f32.mrf.mxu0
      %v545 = vpop.f32.mrf.mxu0
      %546 = vdwg.mxu0
      %v547 = vadd.f32 %v497, %v542
      %s548 = scalar_lea.vmem %s2, 10
      %v549 = vld [vmem:[%s548] sm:$0x3]
      %v550 = vrot.slane %v443, 1
      %v552 = vsel %vm282, %v550, 0
      %v555 = vsel %vm286, %v549, 0
      %557 = vmatprep.subr.bf16.mxu0 0
      %558 = vmatpush1.bf16.msra.mxu0 0
      %559 = vmatprep.subr.bf16.mxu0 0
      %560 = vmatpush1.bf16.msra.mxu0 0
      %561 = vmatprep.subr.bf16.mxu0 0
      %562 = vmatpush1.bf16.msra.mxu0 0
      %563 = vmatprep.subr.bf16.mxu0 0
      %564 = vmatpush1.bf16.msra.mxu0 0
      %565 = vmatprep.subr.bf16.mxu0 0
      %566 = vmatpush1.bf16.msra.mxu0 0
      %567 = vmatprep.subr.bf16.mxu0 0
      %568 = vmatpush1.bf16.msra.mxu0 0
      %569 = vmatprep.subr.bf16.mxu0 0
      %570 = vmatpush1.bf16.msra.mxu0 0
      %571 = vmatprep.subr.bf16.mxu0 0
      %572 = vmatpush1.bf16.msra.mxu0 %v555
      %573 = vmatprep.subr.bf16.mxu0 0
      %574 = vmatpush2.bf16.msra.mxu0 0
      %575 = vmatprep.subr.bf16.mxu0 0
      %576 = vmatpush2.bf16.msra.mxu0 0
      %577 = vmatprep.subr.bf16.mxu0 0
      %578 = vmatpush2.bf16.msra.mxu0 0
      %579 = vmatprep.subr.bf16.mxu0 0
      %580 = vmatpush2.bf16.msra.mxu0 0
      %581 = vmatprep.subr.bf16.mxu0 0
      %582 = vmatpush2.bf16.msra.mxu0 0
      %583 = vmatprep.subr.bf16.mxu0 0
      %584 = vmatpush2.bf16.msra.mxu0 0
      %585 = vmatprep.subr.bf16.mxu0 0
      %586 = vmatpush2.bf16.msra.mxu0 0
      %587 = vmatprep.subr.bf16.mxu0 0
      %588 = vmatpush2.bf16.msra.mxu0 0
      %589 = vmatprep.mubr.bf16.mxu0 0
      %590 = vmatmul.mubr.bf16.gmra.mxu0 %v552
      %v591 = vpop.f32.mrf.mxu0
      %v592 = vadd.f32 0.0, %v591
      %v593 = vpop.f32.mrf.mxu0
      %v594 = vpop.f32.mrf.mxu0
      %v595 = vpop.f32.mrf.mxu0
      %596 = vdwg.mxu0
      %v597 = vadd.f32 %v547, %v592
      %s598 = scalar_lea.vmem %s2, 12
      %v599 = vld [vmem:[%s598] sm:$0x3]
      %v600 = vrot.slane %v384, 1
      %v601 = vrot.slane %v386, 2
      %v602 = vor.u32 %v600, %v601
      %v604 = vsel %vm282, %v602, 0
      %v607 = vsel %vm286, %v599, 0
      %609 = vmatprep.subr.bf16.mxu0 0
      %610 = vmatpush1.bf16.msra.mxu0 0
      %611 = vmatprep.subr.bf16.mxu0 0
      %612 = vmatpush1.bf16.msra.mxu0 0
      %613 = vmatprep.subr.bf16.mxu0 0
      %614 = vmatpush1.bf16.msra.mxu0 0
      %615 = vmatprep.subr.bf16.mxu0 0
      %616 = vmatpush1.bf16.msra.mxu0 0
      %617 = vmatprep.subr.bf16.mxu0 0
      %618 = vmatpush1.bf16.msra.mxu0 0
      %619 = vmatprep.subr.bf16.mxu0 0
      %620 = vmatpush1.bf16.msra.mxu0 0
      %621 = vmatprep.subr.bf16.mxu0 0
      %622 = vmatpush1.bf16.msra.mxu0 0
      %623 = vmatprep.subr.bf16.mxu0 0
      %624 = vmatpush1.bf16.msra.mxu0 %v607
      %625 = vmatprep.subr.bf16.mxu0 0
      %626 = vmatpush2.bf16.msra.mxu0 0
      %627 = vmatprep.subr.bf16.mxu0 0
      %628 = vmatpush2.bf16.msra.mxu0 0
      %629 = vmatprep.subr.bf16.mxu0 0
      %630 = vmatpush2.bf16.msra.mxu0 0
      %631 = vmatprep.subr.bf16.mxu0 0
      %632 = vmatpush2.bf16.msra.mxu0 0
      %633 = vmatprep.subr.bf16.mxu0 0
      %634 = vmatpush2.bf16.msra.mxu0 0
      %635 = vmatprep.subr.bf16.mxu0 0
      %636 = vmatpush2.bf16.msra.mxu0 0
      %637 = vmatprep.subr.bf16.mxu0 0
      %638 = vmatpush2.bf16.msra.mxu0 0
      %639 = vmatprep.subr.bf16.mxu0 0
      %640 = vmatpush2.bf16.msra.mxu0 0
      %641 = vmatprep.mubr.bf16.mxu0 0
      %642 = vmatmul.mubr.bf16.gmra.mxu0 %v604
      %v643 = vpop.f32.mrf.mxu0
      %v644 = vadd.f32 0.0, %v643
      %v645 = vpop.f32.mrf.mxu0
      %v646 = vpop.f32.mrf.mxu0
      %v647 = vpop.f32.mrf.mxu0
      %648 = vdwg.mxu0
      %v649 = vadd.f32 %v597, %v644
      %s650 = scalar_lea.vmem %s2, 14
      %v651 = vld [vmem:[%s650] sm:$0x3]
      %v652 = vrot.slane %v445, 1
      %v653 = vrot.slane %v447, 2
      %v654 = vor.u32 %v652, %v653
      %v656 = vsel %vm282, %v654, 0
      %v659 = vsel %vm286, %v651, 0
      %661 = vmatprep.subr.bf16.mxu0 0
      %662 = vmatpush1.bf16.msra.mxu0 0
      %663 = vmatprep.subr.bf16.mxu0 0
      %664 = vmatpush1.bf16.msra.mxu0 0
      %665 = vmatprep.subr.bf16.mxu0 0
      %666 = vmatpush1.bf16.msra.mxu0 0
      %667 = vmatprep.subr.bf16.mxu0 0
      %668 = vmatpush1.bf16.msra.mxu0 0
      %669 = vmatprep.subr.bf16.mxu0 0
      %670 = vmatpush1.bf16.msra.mxu0 0
      %671 = vmatprep.subr.bf16.mxu0 0
      %672 = vmatpush1.bf16.msra.mxu0 0
      %673 = vmatprep.subr.bf16.mxu0 0
      %674 = vmatpush1.bf16.msra.mxu0 0
      %675 = vmatprep.subr.bf16.mxu0 0
      %676 = vmatpush1.bf16.msra.mxu0 %v659
      %677 = vmatprep.subr.bf16.mxu0 0
      %678 = vmatpush2.bf16.msra.mxu0 0
      %679 = vmatprep.subr.bf16.mxu0 0
      %680 = vmatpush2.bf16.msra.mxu0 0
      %681 = vmatprep.subr.bf16.mxu0 0
      %682 = vmatpush2.bf16.msra.mxu0 0
      %683 = vmatprep.subr.bf16.mxu0 0
      %684 = vmatpush2.bf16.msra.mxu0 0
      %685 = vmatprep.subr.bf16.mxu0 0
      %686 = vmatpush2.bf16.msra.mxu0 0
      %687 = vmatprep.subr.bf16.mxu0 0
      %688 = vmatpush2.bf16.msra.mxu0 0
      %689 = vmatprep.subr.bf16.mxu0 0
      %690 = vmatpush2.bf16.msra.mxu0 0
      %691 = vmatprep.subr.bf16.mxu0 0
      %692 = vmatpush2.bf16.msra.mxu0 0
      %693 = vmatprep.mubr.bf16.mxu0 0
      %694 = vmatmul.mubr.bf16.gmra.mxu0 %v656
      %v695 = vpop.f32.mrf.mxu0
      %v696 = vadd.f32 0.0, %v695
      %v697 = vpop.f32.mrf.mxu0
      %v698 = vpop.f32.mrf.mxu0
      %v699 = vpop.f32.mrf.mxu0
      %700 = vdwg.mxu0
      %v701 = vadd.f32 %v649, %v696
      %v702 = vlaneseq
      %v703 = vshrl.u32 %v702, 7
      %v704 = vsub.s32 0, %v703
      %v705 = vrot.slane %v273, %v704
      %v706 = vadd.f32 %v701, %v705
      %v707 = vmax.f32 %v706, 0.0
      %v708 = vlaneseq
      %v709 = vshrl.u32 %v708, 7
      %v710 = vsub.s32 1, %v709
      %v711 = vrot.slane %v273, %v710
      %v712 = vmul.f32 %v707, %v711
      %v713 = vlaneseq
      %v714 = vshrl.u32 %v713, 7
      %v715 = vsub.s32 2, %v714
      %v716 = vrot.slane %v273, %v715
      %v717 = vadd.f32 %v712, %v716
      %718 = vst [vmem:[#allocation2] sm:$0xf] 0.0
      %719 = vst [vmem:[#allocation2 + $0xc] sm:$0xf] 0.0
      %720 = vst [vmem:[#allocation2 + $0x4] sm:$0xff] %v717
      %v721 = vld [vmem:[#allocation2] sm:$0xff]
      %v722 = vld [vmem:[#allocation2 + $0x8] sm:$0x1]
      %v723 = vpack.c.bf16 %v722, %v721
      %v724 = vld [vmem:[%s3] sm:$0xf]
      %v725 = vld [vmem:[%s3 + $0x4] sm:$0xf]
      %v726 = vld [vmem:[%s3 + $0x8] sm:$0xf]
      %v727 = vld [vmem:[%s3 + $0xc] sm:$0xf]
      %v728 = vld [vmem:[%s3 + $0x10] sm:$0xf]
      %v729 = vld [vmem:[%s3 + $0x14] sm:$0xf]
      %v730 = vld [vmem:[%s3 + $0x18] sm:$0xf]
      %v731 = vld [vmem:[%s3 + $0x1c] sm:$0xf]
      %v732 = vld [vmem:[%s3 + $0x20] sm:$0xf]
      %v733 = vld [vmem:[%s3 + $0x24] sm:$0xf]
      %v734 = vld [vmem:[%s3 + $0x28] sm:$0xf]
      %v735 = vld [vmem:[%s3 + $0x2c] sm:$0xf]
      %v736 = vld [vmem:[%s3 + $0x30] sm:$0xf]
      %v737 = vld [vmem:[%s3 + $0x34] sm:$0xf]
      %v738 = vld [vmem:[%s3 + $0x38] sm:$0xf]
      %v739 = vld [vmem:[%s3 + $0x3c] sm:$0xf]
      %v740 = vld [vmem:[#allocation2 + $0x1] sm:$0xff]
      %v741 = vld [vmem:[#allocation2 + $0x9] sm:$0x1]
      %v742 = vpack.c.bf16 %v741, %v740
      %s743 = scalar_lea.vmem %s3, 64
      %v744 = vld [vmem:[%s743] sm:$0xf]
      %v745 = vld [vmem:[%s743 + $0x4] sm:$0xf]
      %v746 = vld [vmem:[%s743 + $0x8] sm:$0xf]
      %v747 = vld [vmem:[%s743 + $0xc] sm:$0xf]
      %v748 = vld [vmem:[%s743 + $0x10] sm:$0xf]
      %v749 = vld [vmem:[%s743 + $0x14] sm:$0xf]
      %v750 = vld [vmem:[%s743 + $0x18] sm:$0xf]
      %v751 = vld [vmem:[%s743 + $0x1c] sm:$0xf]
      %v752 = vld [vmem:[%s743 + $0x20] sm:$0xf]
      %v753 = vld [vmem:[%s743 + $0x24] sm:$0xf]
      %v754 = vld [vmem:[%s743 + $0x28] sm:$0xf]
      %v755 = vld [vmem:[%s743 + $0x2c] sm:$0xf]
      %v756 = vld [vmem:[%s743 + $0x30] sm:$0xf]
      %v757 = vld [vmem:[%s743 + $0x34] sm:$0xf]
      %v758 = vld [vmem:[%s743 + $0x38] sm:$0xf]
      %v759 = vld [vmem:[%s743 + $0x3c] sm:$0xf]
      %v776 = vunpack.c.l.b16 %v744
      %v777 = vunpack.c.l.b16 %v745
      %v778 = vunpack.c.l.b16 %v746
      %v779 = vunpack.c.l.b16 %v747
      %v780 = vunpack.c.l.b16 %v748
      %v781 = vunpack.c.l.b16 %v749
      %v782 = vunpack.c.l.b16 %v750
      %v783 = vunpack.c.l.b16 %v751
      %v784 = vunpack.c.l.b16 %v752
      %v785 = vunpack.c.l.b16 %v753
      %v786 = vunpack.c.l.b16 %v754
      %v787 = vunpack.c.l.b16 %v755
      %v788 = vunpack.c.l.b16 %v756
      %v789 = vunpack.c.l.b16 %v757
      %v790 = vunpack.c.l.b16 %v758
      %v791 = vunpack.c.l.b16 %v759
      %v792 = vpack.c.b16 %v777, %v776
      %v793 = vpack.c.b16 %v779, %v778
      %v794 = vpack.c.b16 %v781, %v780
      %v795 = vpack.c.b16 %v783, %v782
      %v796 = vpack.c.b16 %v785, %v784
      %v797 = vpack.c.b16 %v787, %v786
      %v798 = vpack.c.b16 %v789, %v788
      %v799 = vpack.c.b16 %v791, %v790
      %808 = vmatprep.subr.bf16.mxu0 0
      %809 = vmatpush1.bf16.msra.mxu0 %v799
      %810 = vmatprep.subr.bf16.mxu0 0
      %811 = vmatpush1.bf16.msra.mxu0 %v798
      %812 = vmatprep.subr.bf16.mxu0 0
      %813 = vmatpush1.bf16.msra.mxu0 %v797
      %814 = vmatprep.subr.bf16.mxu0 0
      %815 = vmatpush1.bf16.msra.mxu0 %v796
      %816 = vmatprep.subr.bf16.mxu0 0
      %817 = vmatpush1.bf16.msra.mxu0 %v795
      %818 = vmatprep.subr.bf16.mxu0 0
      %819 = vmatpush1.bf16.msra.mxu0 %v794
      %820 = vmatprep.subr.bf16.mxu0 0
      %821 = vmatpush1.bf16.msra.mxu0 %v793
      %822 = vmatprep.subr.bf16.mxu0 0
      %823 = vmatpush1.bf16.msra.mxu0 %v792
      %824 = vmatprep.subr.bf16.mxu0 0
      %825 = vmatpush2.bf16.msra.mxu0 0
      %826 = vmatprep.subr.bf16.mxu0 0
      %827 = vmatpush2.bf16.msra.mxu0 0
      %828 = vmatprep.subr.bf16.mxu0 0
      %829 = vmatpush2.bf16.msra.mxu0 0
      %830 = vmatprep.subr.bf16.mxu0 0
      %831 = vmatpush2.bf16.msra.mxu0 0
      %832 = vmatprep.subr.bf16.mxu0 0
      %833 = vmatpush2.bf16.msra.mxu0 0
      %834 = vmatprep.subr.bf16.mxu0 0
      %835 = vmatpush2.bf16.msra.mxu0 0
      %836 = vmatprep.subr.bf16.mxu0 0
      %837 = vmatpush2.bf16.msra.mxu0 0
      %838 = vmatprep.subr.bf16.mxu0 0
      %839 = vmatpush2.bf16.msra.mxu0 0
      %840 = vmatprep.mubr.bf16.mxu0 0
      %841 = vmatmul.mubr.bf16.gmra.mxu0 %v742
      %v842 = vpop.f32.mrf.mxu0
      %v843 = vadd.f32 0.0, %v842
      %v844 = vpop.f32.mrf.mxu0
      %v845 = vpop.f32.mrf.mxu0
      %v846 = vadd.f32 0.0, %v845
      %v847 = vpop.f32.mrf.mxu0
      %848 = vdwg.mxu0
      %v865 = vunpack.c.l.b16 %v724
      %v866 = vunpack.c.l.b16 %v725
      %v867 = vunpack.c.l.b16 %v726
      %v868 = vunpack.c.l.b16 %v727
      %v869 = vunpack.c.l.b16 %v728
      %v870 = vunpack.c.l.b16 %v729
      %v871 = vunpack.c.l.b16 %v730
      %v872 = vunpack.c.l.b16 %v731
      %v873 = vunpack.c.l.b16 %v732
      %v874 = vunpack.c.l.b16 %v733
      %v875 = vunpack.c.l.b16 %v734
      %v876 = vunpack.c.l.b16 %v735
      %v877 = vunpack.c.l.b16 %v736
      %v878 = vunpack.c.l.b16 %v737
      %v879 = vunpack.c.l.b16 %v738
      %v880 = vunpack.c.l.b16 %v739
      %v881 = vpack.c.b16 %v866, %v865
      %v882 = vpack.c.b16 %v868, %v867
      %v883 = vpack.c.b16 %v870, %v869
      %v884 = vpack.c.b16 %v872, %v871
      %v885 = vpack.c.b16 %v874, %v873
      %v886 = vpack.c.b16 %v876, %v875
      %v887 = vpack.c.b16 %v878, %v877
      %v888 = vpack.c.b16 %v880, %v879
      %897 = vmatprep.subr.bf16.mxu0 0
      %898 = vmatpush1.bf16.msra.mxu0 %v888
      %899 = vmatprep.subr.bf16.mxu0 0
      %900 = vmatpush1.bf16.msra.mxu0 %v887
      %901 = vmatprep.subr.bf16.mxu0 0
      %902 = vmatpush1.bf16.msra.mxu0 %v886
      %903 = vmatprep.subr.bf16.mxu0 0
      %904 = vmatpush1.bf16.msra.mxu0 %v885
      %905 = vmatprep.subr.bf16.mxu0 0
      %906 = vmatpush1.bf16.msra.mxu0 %v884
      %907 = vmatprep.subr.bf16.mxu0 0
      %908 = vmatpush1.bf16.msra.mxu0 %v883
      %909 = vmatprep.subr.bf16.mxu0 0
      %910 = vmatpush1.bf16.msra.mxu0 %v882
      %911 = vmatprep.subr.bf16.mxu0 0
      %912 = vmatpush1.bf16.msra.mxu0 %v881
      %913 = vmatprep.subr.bf16.mxu0 0
      %914 = vmatpush2.bf16.msra.mxu0 0
      %915 = vmatprep.subr.bf16.mxu0 0
      %916 = vmatpush2.bf16.msra.mxu0 0
      %917 = vmatprep.subr.bf16.mxu0 0
      %918 = vmatpush2.bf16.msra.mxu0 0
      %919 = vmatprep.subr.bf16.mxu0 0
      %920 = vmatpush2.bf16.msra.mxu0 0
      %921 = vmatprep.subr.bf16.mxu0 0
      %922 = vmatpush2.bf16.msra.mxu0 0
      %923 = vmatprep.subr.bf16.mxu0 0
      %924 = vmatpush2.bf16.msra.mxu0 0
      %925 = vmatprep.subr.bf16.mxu0 0
      %926 = vmatpush2.bf16.msra.mxu0 0
      %927 = vmatprep.subr.bf16.mxu0 0
      %928 = vmatpush2.bf16.msra.mxu0 0
      %929 = vmatprep.mubr.bf16.mxu0 0
      %930 = vmatmul.mubr.bf16.gmra.mxu0 %v723
      %v931 = vpop.f32.mrf.mxu0
      %v932 = vadd.f32 %v843, %v931
      %v933 = vpop.f32.mrf.mxu0
      %v934 = vpop.f32.mrf.mxu0
      %v935 = vadd.f32 %v846, %v934
      %v936 = vpop.f32.mrf.mxu0
      %937 = vdwg.mxu0
      %v938 = vld [vmem:[#allocation2 + $0x2] sm:$0xff]
      %v939 = vld [vmem:[#allocation2 + $0xa] sm:$0x1]
      %v940 = vpack.c.bf16 %v939, %v938
      %s941 = scalar_lea.vmem %s3, 128
      %v942 = vld [vmem:[%s941] sm:$0xf]
      %v943 = vld [vmem:[%s941 + $0x4] sm:$0xf]
      %v944 = vld [vmem:[%s941 + $0x8] sm:$0xf]
      %v945 = vld [vmem:[%s941 + $0xc] sm:$0xf]
      %v946 = vld [vmem:[%s941 + $0x10] sm:$0xf]
      %v947 = vld [vmem:[%s941 + $0x14] sm:$0xf]
      %v948 = vld [vmem:[%s941 + $0x18] sm:$0xf]
      %v949 = vld [vmem:[%s941 + $0x1c] sm:$0xf]
      %v950 = vld [vmem:[%s941 + $0x20] sm:$0xf]
      %v951 = vld [vmem:[%s941 + $0x24] sm:$0xf]
      %v952 = vld [vmem:[%s941 + $0x28] sm:$0xf]
      %v953 = vld [vmem:[%s941 + $0x2c] sm:$0xf]
      %v954 = vld [vmem:[%s941 + $0x30] sm:$0xf]
      %v955 = vld [vmem:[%s941 + $0x34] sm:$0xf]
      %v956 = vld [vmem:[%s941 + $0x38] sm:$0xf]
      %v957 = vld [vmem:[%s941 + $0x3c] sm:$0xf]
      %v974 = vunpack.c.l.b16 %v942
      %v975 = vunpack.c.l.b16 %v943
      %v976 = vunpack.c.l.b16 %v944
      %v977 = vunpack.c.l.b16 %v945
      %v978 = vunpack.c.l.b16 %v946
      %v979 = vunpack.c.l.b16 %v947
      %v980 = vunpack.c.l.b16 %v948
      %v981 = vunpack.c.l.b16 %v949
      %v982 = vunpack.c.l.b16 %v950
      %v983 = vunpack.c.l.b16 %v951
      %v984 = vunpack.c.l.b16 %v952
      %v985 = vunpack.c.l.b16 %v953
      %v986 = vunpack.c.l.b16 %v954
      %v987 = vunpack.c.l.b16 %v955
      %v988 = vunpack.c.l.b16 %v956
      %v989 = vunpack.c.l.b16 %v957
      %v990 = vpack.c.b16 %v975, %v974
      %v991 = vpack.c.b16 %v977, %v976
      %v992 = vpack.c.b16 %v979, %v978
      %v993 = vpack.c.b16 %v981, %v980
      %v994 = vpack.c.b16 %v983, %v982
      %v995 = vpack.c.b16 %v985, %v984
      %v996 = vpack.c.b16 %v987, %v986
      %v997 = vpack.c.b16 %v989, %v988
      %1006 = vmatprep.subr.bf16.mxu0 0
      %1007 = vmatpush1.bf16.msra.mxu0 %v997
      %1008 = vmatprep.subr.bf16.mxu0 0
      %1009 = vmatpush1.bf16.msra.mxu0 %v996
      %1010 = vmatprep.subr.bf16.mxu0 0
      %1011 = vmatpush1.bf16.msra.mxu0 %v995
      %1012 = vmatprep.subr.bf16.mxu0 0
      %1013 = vmatpush1.bf16.msra.mxu0 %v994
      %1014 = vmatprep.subr.bf16.mxu0 0
      %1015 = vmatpush1.bf16.msra.mxu0 %v993
      %1016 = vmatprep.subr.bf16.mxu0 0
      %1017 = vmatpush1.bf16.msra.mxu0 %v992
      %1018 = vmatprep.subr.bf16.mxu0 0
      %1019 = vmatpush1.bf16.msra.mxu0 %v991
      %1020 = vmatprep.subr.bf16.mxu0 0
      %1021 = vmatpush1.bf16.msra.mxu0 %v990
      %1022 = vmatprep.subr.bf16.mxu0 0
      %1023 = vmatpush2.bf16.msra.mxu0 0
      %1024 = vmatprep.subr.bf16.mxu0 0
      %1025 = vmatpush2.bf16.msra.mxu0 0
      %1026 = vmatprep.subr.bf16.mxu0 0
      %1027 = vmatpush2.bf16.msra.mxu0 0
      %1028 = vmatprep.subr.bf16.mxu0 0
      %1029 = vmatpush2.bf16.msra.mxu0 0
      %1030 = vmatprep.subr.bf16.mxu0 0
      %1031 = vmatpush2.bf16.msra.mxu0 0
      %1032 = vmatprep.subr.bf16.mxu0 0
      %1033 = vmatpush2.bf16.msra.mxu0 0
      %1034 = vmatprep.subr.bf16.mxu0 0
      %1035 = vmatpush2.bf16.msra.mxu0 0
      %1036 = vmatprep.subr.bf16.mxu0 0
      %1037 = vmatpush2.bf16.msra.mxu0 0
      %1038 = vmatprep.mubr.bf16.mxu0 0
      %1039 = vmatmul.mubr.bf16.gmra.mxu0 %v940
      %v1040 = vpop.f32.mrf.mxu0
      %v1041 = vadd.f32 0.0, %v1040
      %v1042 = vpop.f32.mrf.mxu0
      %v1043 = vpop.f32.mrf.mxu0
      %v1044 = vadd.f32 0.0, %v1043
      %v1045 = vpop.f32.mrf.mxu0
      %1046 = vdwg.mxu0
      %v1047 = vadd.f32 %v932, %v1041
      %v1048 = vadd.f32 %v935, %v1044
      %v1049 = vld [vmem:[#allocation2 + $0x3] sm:$0xff]
      %v1050 = vld [vmem:[#allocation2 + $0xb] sm:$0x1]
      %v1051 = vpack.c.bf16 %v1050, %v1049
      %s1052 = scalar_lea.vmem %s3, 192
      %v1053 = vld [vmem:[%s1052] sm:$0xf]
      %v1054 = vld [vmem:[%s1052 + $0x4] sm:$0xf]
      %v1055 = vld [vmem:[%s1052 + $0x8] sm:$0xf]
      %v1056 = vld [vmem:[%s1052 + $0xc] sm:$0xf]
      %v1057 = vld [vmem:[%s1052 + $0x10] sm:$0xf]
      %v1058 = vld [vmem:[%s1052 + $0x14] sm:$0xf]
      %v1059 = vld [vmem:[%s1052 + $0x18] sm:$0xf]
      %v1060 = vld [vmem:[%s1052 + $0x1c] sm:$0xf]
      %v1061 = vld [vmem:[%s1052 + $0x20] sm:$0xf]
      %v1062 = vld [vmem:[%s1052 + $0x24] sm:$0xf]
      %v1063 = vld [vmem:[%s1052 + $0x28] sm:$0xf]
      %v1064 = vld [vmem:[%s1052 + $0x2c] sm:$0xf]
      %v1065 = vld [vmem:[%s1052 + $0x30] sm:$0xf]
      %v1066 = vld [vmem:[%s1052 + $0x34] sm:$0xf]
      %v1067 = vld [vmem:[%s1052 + $0x38] sm:$0xf]
      %v1068 = vld [vmem:[%s1052 + $0x3c] sm:$0xf]
      %v1085 = vunpack.c.l.b16 %v1053
      %v1086 = vunpack.c.l.b16 %v1054
      %v1087 = vunpack.c.l.b16 %v1055
      %v1088 = vunpack.c.l.b16 %v1056
      %v1089 = vunpack.c.l.b16 %v1057
      %v1090 = vunpack.c.l.b16 %v1058
      %v1091 = vunpack.c.l.b16 %v1059
      %v1092 = vunpack.c.l.b16 %v1060
      %v1093 = vunpack.c.l.b16 %v1061
      %v1094 = vunpack.c.l.b16 %v1062
      %v1095 = vunpack.c.l.b16 %v1063
      %v1096 = vunpack.c.l.b16 %v1064
      %v1097 = vunpack.c.l.b16 %v1065
      %v1098 = vunpack.c.l.b16 %v1066
      %v1099 = vunpack.c.l.b16 %v1067
      %v1100 = vunpack.c.l.b16 %v1068
      %v1101 = vpack.c.b16 %v1086, %v1085
      %v1102 = vpack.c.b16 %v1088, %v1087
      %v1103 = vpack.c.b16 %v1090, %v1089
      %v1104 = vpack.c.b16 %v1092, %v1091
      %v1105 = vpack.c.b16 %v1094, %v1093
      %v1106 = vpack.c.b16 %v1096, %v1095
      %v1107 = vpack.c.b16 %v1098, %v1097
      %v1108 = vpack.c.b16 %v1100, %v1099
      %1117 = vmatprep.subr.bf16.mxu0 0
      %1118 = vmatpush1.bf16.msra.mxu0 %v1108
      %1119 = vmatprep.subr.bf16.mxu0 0
      %1120 = vmatpush1.bf16.msra.mxu0 %v1107
      %1121 = vmatprep.subr.bf16.mxu0 0
      %1122 = vmatpush1.bf16.msra.mxu0 %v1106
      %1123 = vmatprep.subr.bf16.mxu0 0
      %1124 = vmatpush1.bf16.msra.mxu0 %v1105
      %1125 = vmatprep.subr.bf16.mxu0 0
      %1126 = vmatpush1.bf16.msra.mxu0 %v1104
      %1127 = vmatprep.subr.bf16.mxu0 0
      %1128 = vmatpush1.bf16.msra.mxu0 %v1103
      %1129 = vmatprep.subr.bf16.mxu0 0
      %1130 = vmatpush1.bf16.msra.mxu0 %v1102
      %1131 = vmatprep.subr.bf16.mxu0 0
      %1132 = vmatpush1.bf16.msra.mxu0 %v1101
      %1133 = vmatprep.subr.bf16.mxu0 0
      %1134 = vmatpush2.bf16.msra.mxu0 0
      %1135 = vmatprep.subr.bf16.mxu0 0
      %1136 = vmatpush2.bf16.msra.mxu0 0
      %1137 = vmatprep.subr.bf16.mxu0 0
      %1138 = vmatpush2.bf16.msra.mxu0 0
      %1139 = vmatprep.subr.bf16.mxu0 0
      %1140 = vmatpush2.bf16.msra.mxu0 0
      %1141 = vmatprep.subr.bf16.mxu0 0
      %1142 = vmatpush2.bf16.msra.mxu0 0
      %1143 = vmatprep.subr.bf16.mxu0 0
      %1144 = vmatpush2.bf16.msra.mxu0 0
      %1145 = vmatprep.subr.bf16.mxu0 0
      %1146 = vmatpush2.bf16.msra.mxu0 0
      %1147 = vmatprep.subr.bf16.mxu0 0
      %1148 = vmatpush2.bf16.msra.mxu0 0
      %1149 = vmatprep.mubr.bf16.mxu0 0
      %1150 = vmatmul.mubr.bf16.gmra.mxu0 %v1051
      %v1151 = vpop.f32.mrf.mxu0
      %v1152 = vadd.f32 0.0, %v1151
      %v1153 = vpop.f32.mrf.mxu0
      %v1154 = vpop.f32.mrf.mxu0
      %v1155 = vadd.f32 0.0, %v1154
      %v1156 = vpop.f32.mrf.mxu0
      %1157 = vdwg.mxu0
      %v1158 = vadd.f32 %v1047, %v1152
      %v1159 = vadd.f32 %v1048, %v1155
      %v1160 = vld [vmem:[#allocation2 + $0x4] sm:$0xff]
      %v1161 = vld [vmem:[#allocation2 + $0xc] sm:$0x1]
      %v1162 = vpack.c.bf16 %v1161, %v1160
      %s1163 = scalar_lea.vmem %s3, 256
      %v1164 = vld [vmem:[%s1163] sm:$0xf]
      %v1165 = vld [vmem:[%s1163 + $0x4] sm:$0xf]
      %v1166 = vld [vmem:[%s1163 + $0x8] sm:$0xf]
      %v1167 = vld [vmem:[%s1163 + $0xc] sm:$0xf]
      %v1168 = vld [vmem:[%s1163 + $0x10] sm:$0xf]
      %v1169 = vld [vmem:[%s1163 + $0x14] sm:$0xf]
      %v1170 = vld [vmem:[%s1163 + $0x18] sm:$0xf]
      %v1171 = vld [vmem:[%s1163 + $0x1c] sm:$0xf]
      %v1172 = vld [vmem:[%s1163 + $0x20] sm:$0xf]
      %v1173 = vld [vmem:[%s1163 + $0x24] sm:$0xf]
      %v1174 = vld [vmem:[%s1163 + $0x28] sm:$0xf]
      %v1175 = vld [vmem:[%s1163 + $0x2c] sm:$0xf]
      %v1176 = vld [vmem:[%s1163 + $0x30] sm:$0xf]
      %v1177 = vld [vmem:[%s1163 + $0x34] sm:$0xf]
      %v1178 = vld [vmem:[%s1163 + $0x38] sm:$0xf]
      %v1179 = vld [vmem:[%s1163 + $0x3c] sm:$0xf]
      %v1196 = vunpack.c.l.b16 %v1164
      %v1197 = vunpack.c.l.b16 %v1165
      %v1198 = vunpack.c.l.b16 %v1166
      %v1199 = vunpack.c.l.b16 %v1167
      %v1200 = vunpack.c.l.b16 %v1168
      %v1201 = vunpack.c.l.b16 %v1169
      %v1202 = vunpack.c.l.b16 %v1170
      %v1203 = vunpack.c.l.b16 %v1171
      %v1204 = vunpack.c.l.b16 %v1172
      %v1205 = vunpack.c.l.b16 %v1173
      %v1206 = vunpack.c.l.b16 %v1174
      %v1207 = vunpack.c.l.b16 %v1175
      %v1208 = vunpack.c.l.b16 %v1176
      %v1209 = vunpack.c.l.b16 %v1177
      %v1210 = vunpack.c.l.b16 %v1178
      %v1211 = vunpack.c.l.b16 %v1179
      %v1212 = vpack.c.b16 %v1197, %v1196
      %v1213 = vpack.c.b16 %v1199, %v1198
      %v1214 = vpack.c.b16 %v1201, %v1200
      %v1215 = vpack.c.b16 %v1203, %v1202
      %v1216 = vpack.c.b16 %v1205, %v1204
      %v1217 = vpack.c.b16 %v1207, %v1206
      %v1218 = vpack.c.b16 %v1209, %v1208
      %v1219 = vpack.c.b16 %v1211, %v1210
      %1228 = vmatprep.subr.bf16.mxu0 0
      %1229 = vmatpush1.bf16.msra.mxu0 %v1219
      %1230 = vmatprep.subr.bf16.mxu0 0
      %1231 = vmatpush1.bf16.msra.mxu0 %v1218
      %1232 = vmatprep.subr.bf16.mxu0 0
      %1233 = vmatpush1.bf16.msra.mxu0 %v1217
      %1234 = vmatprep.subr.bf16.mxu0 0
      %1235 = vmatpush1.bf16.msra.mxu0 %v1216
      %1236 = vmatprep.subr.bf16.mxu0 0
      %1237 = vmatpush1.bf16.msra.mxu0 %v1215
      %1238 = vmatprep.subr.bf16.mxu0 0
      %1239 = vmatpush1.bf16.msra.mxu0 %v1214
      %1240 = vmatprep.subr.bf16.mxu0 0
      %1241 = vmatpush1.bf16.msra.mxu0 %v1213
      %1242 = vmatprep.subr.bf16.mxu0 0
      %1243 = vmatpush1.bf16.msra.mxu0 %v1212
      %1244 = vmatprep.subr.bf16.mxu0 0
      %1245 = vmatpush2.bf16.msra.mxu0 0
      %1246 = vmatprep.subr.bf16.mxu0 0
      %1247 = vmatpush2.bf16.msra.mxu0 0
      %1248 = vmatprep.subr.bf16.mxu0 0
      %1249 = vmatpush2.bf16.msra.mxu0 0
      %1250 = vmatprep.subr.bf16.mxu0 0
      %1251 = vmatpush2.bf16.msra.mxu0 0
      %1252 = vmatprep.subr.bf16.mxu0 0
      %1253 = vmatpush2.bf16.msra.mxu0 0
      %1254 = vmatprep.subr.bf16.mxu0 0
      %1255 = vmatpush2.bf16.msra.mxu0 0
      %1256 = vmatprep.subr.bf16.mxu0 0
      %1257 = vmatpush2.bf16.msra.mxu0 0
      %1258 = vmatprep.subr.bf16.mxu0 0
      %1259 = vmatpush2.bf16.msra.mxu0 0
      %1260 = vmatprep.mubr.bf16.mxu0 0
      %1261 = vmatmul.mubr.bf16.gmra.mxu0 %v1162
      %v1262 = vpop.f32.mrf.mxu0
      %v1263 = vadd.f32 0.0, %v1262
      %v1264 = vpop.f32.mrf.mxu0
      %v1265 = vpop.f32.mrf.mxu0
      %v1266 = vadd.f32 0.0, %v1265
      %v1267 = vpop.f32.mrf.mxu0
      %1268 = vdwg.mxu0
      %v1269 = vadd.f32 %v1158, %v1263
      %v1270 = vadd.f32 %v1159, %v1266
      %v1271 = vld [vmem:[#allocation2 + $0x5] sm:$0xff]
      %v1272 = vld [vmem:[#allocation2 + $0xd] sm:$0x1]
      %v1273 = vpack.c.bf16 %v1272, %v1271
      %s1274 = scalar_lea.vmem %s3, 320
      %v1275 = vld [vmem:[%s1274] sm:$0xf]
      %v1276 = vld [vmem:[%s1274 + $0x4] sm:$0xf]
      %v1277 = vld [vmem:[%s1274 + $0x8] sm:$0xf]
      %v1278 = vld [vmem:[%s1274 + $0xc] sm:$0xf]
      %v1279 = vld [vmem:[%s1274 + $0x10] sm:$0xf]
      %v1280 = vld [vmem:[%s1274 + $0x14] sm:$0xf]
      %v1281 = vld [vmem:[%s1274 + $0x18] sm:$0xf]
      %v1282 = vld [vmem:[%s1274 + $0x1c] sm:$0xf]
      %v1283 = vld [vmem:[%s1274 + $0x20] sm:$0xf]
      %v1284 = vld [vmem:[%s1274 + $0x24] sm:$0xf]
      %v1285 = vld [vmem:[%s1274 + $0x28] sm:$0xf]
      %v1286 = vld [vmem:[%s1274 + $0x2c] sm:$0xf]
      %v1287 = vld [vmem:[%s1274 + $0x30] sm:$0xf]
      %v1288 = vld [vmem:[%s1274 + $0x34] sm:$0xf]
      %v1289 = vld [vmem:[%s1274 + $0x38] sm:$0xf]
      %v1290 = vld [vmem:[%s1274 + $0x3c] sm:$0xf]
      %v1307 = vunpack.c.l.b16 %v1275
      %v1308 = vunpack.c.l.b16 %v1276
      %v1309 = vunpack.c.l.b16 %v1277
      %v1310 = vunpack.c.l.b16 %v1278
      %v1311 = vunpack.c.l.b16 %v1279
      %v1312 = vunpack.c.l.b16 %v1280
      %v1313 = vunpack.c.l.b16 %v1281
      %v1314 = vunpack.c.l.b16 %v1282
      %v1315 = vunpack.c.l.b16 %v1283
      %v1316 = vunpack.c.l.b16 %v1284
      %v1317 = vunpack.c.l.b16 %v1285
      %v1318 = vunpack.c.l.b16 %v1286
      %v1319 = vunpack.c.l.b16 %v1287
      %v1320 = vunpack.c.l.b16 %v1288
      %v1321 = vunpack.c.l.b16 %v1289
      %v1322 = vunpack.c.l.b16 %v1290
      %v1323 = vpack.c.b16 %v1308, %v1307
      %v1324 = vpack.c.b16 %v1310, %v1309
      %v1325 = vpack.c.b16 %v1312, %v1311
      %v1326 = vpack.c.b16 %v1314, %v1313
      %v1327 = vpack.c.b16 %v1316, %v1315
      %v1328 = vpack.c.b16 %v1318, %v1317
      %v1329 = vpack.c.b16 %v1320, %v1319
      %v1330 = vpack.c.b16 %v1322, %v1321
      %1339 = vmatprep.subr.bf16.mxu0 0
      %1340 = vmatpush1.bf16.msra.mxu0 %v1330
      %1341 = vmatprep.subr.bf16.mxu0 0
      %1342 = vmatpush1.bf16.msra.mxu0 %v1329
      %1343 = vmatprep.subr.bf16.mxu0 0
      %1344 = vmatpush1.bf16.msra.mxu0 %v1328
      %1345 = vmatprep.subr.bf16.mxu0 0
      %1346 = vmatpush1.bf16.msra.mxu0 %v1327
      %1347 = vmatprep.subr.bf16.mxu0 0
      %1348 = vmatpush1.bf16.msra.mxu0 %v1326
      %1349 = vmatprep.subr.bf16.mxu0 0
      %1350 = vmatpush1.bf16.msra.mxu0 %v1325
      %1351 = vmatprep.subr.bf16.mxu0 0
      %1352 = vmatpush1.bf16.msra.mxu0 %v1324
      %1353 = vmatprep.subr.bf16.mxu0 0
      %1354 = vmatpush1.bf16.msra.mxu0 %v1323
      %1355 = vmatprep.subr.bf16.mxu0 0
      %1356 = vmatpush2.bf16.msra.mxu0 0
      %1357 = vmatprep.subr.bf16.mxu0 0
      %1358 = vmatpush2.bf16.msra.mxu0 0
      %1359 = vmatprep.subr.bf16.mxu0 0
      %1360 = vmatpush2.bf16.msra.mxu0 0
      %1361 = vmatprep.subr.bf16.mxu0 0
      %1362 = vmatpush2.bf16.msra.mxu0 0
      %1363 = vmatprep.subr.bf16.mxu0 0
      %1364 = vmatpush2.bf16.msra.mxu0 0
      %1365 = vmatprep.subr.bf16.mxu0 0
      %1366 = vmatpush2.bf16.msra.mxu0 0
      %1367 = vmatprep.subr.bf16.mxu0 0
      %1368 = vmatpush2.bf16.msra.mxu0 0
      %1369 = vmatprep.subr.bf16.mxu0 0
      %1370 = vmatpush2.bf16.msra.mxu0 0
      %1371 = vmatprep.mubr.bf16.mxu0 0
      %1372 = vmatmul.mubr.bf16.gmra.mxu0 %v1273
      %v1373 = vpop.f32.mrf.mxu0
      %v1374 = vadd.f32 0.0, %v1373
      %v1375 = vpop.f32.mrf.mxu0
      %v1376 = vpop.f32.mrf.mxu0
      %v1377 = vadd.f32 0.0, %v1376
      %v1378 = vpop.f32.mrf.mxu0
      %1379 = vdwg.mxu0
      %v1380 = vadd.f32 %v1269, %v1374
      %v1381 = vadd.f32 %v1270, %v1377
      %v1382 = vld [vmem:[#allocation2 + $0x6] sm:$0xff]
      %v1383 = vld [vmem:[#allocation2 + $0xe] sm:$0x1]
      %v1384 = vpack.c.bf16 %v1383, %v1382
      %s1385 = scalar_lea.vmem %s3, 384
      %v1386 = vld [vmem:[%s1385] sm:$0xf]
      %v1387 = vld [vmem:[%s1385 + $0x4] sm:$0xf]
      %v1388 = vld [vmem:[%s1385 + $0x8] sm:$0xf]
      %v1389 = vld [vmem:[%s1385 + $0xc] sm:$0xf]
      %v1390 = vld [vmem:[%s1385 + $0x10] sm:$0xf]
      %v1391 = vld [vmem:[%s1385 + $0x14] sm:$0xf]
      %v1392 = vld [vmem:[%s1385 + $0x18] sm:$0xf]
      %v1393 = vld [vmem:[%s1385 + $0x1c] sm:$0xf]
      %v1394 = vld [vmem:[%s1385 + $0x20] sm:$0xf]
      %v1395 = vld [vmem:[%s1385 + $0x24] sm:$0xf]
      %v1396 = vld [vmem:[%s1385 + $0x28] sm:$0xf]
      %v1397 = vld [vmem:[%s1385 + $0x2c] sm:$0xf]
      %v1398 = vld [vmem:[%s1385 + $0x30] sm:$0xf]
      %v1399 = vld [vmem:[%s1385 + $0x34] sm:$0xf]
      %v1400 = vld [vmem:[%s1385 + $0x38] sm:$0xf]
      %v1401 = vld [vmem:[%s1385 + $0x3c] sm:$0xf]
      %v1418 = vunpack.c.l.b16 %v1386
      %v1419 = vunpack.c.l.b16 %v1387
      %v1420 = vunpack.c.l.b16 %v1388
      %v1421 = vunpack.c.l.b16 %v1389
      %v1422 = vunpack.c.l.b16 %v1390
      %v1423 = vunpack.c.l.b16 %v1391
      %v1424 = vunpack.c.l.b16 %v1392
      %v1425 = vunpack.c.l.b16 %v1393
      %v1426 = vunpack.c.l.b16 %v1394
      %v1427 = vunpack.c.l.b16 %v1395
      %v1428 = vunpack.c.l.b16 %v1396
      %v1429 = vunpack.c.l.b16 %v1397
      %v1430 = vunpack.c.l.b16 %v1398
      %v1431 = vunpack.c.l.b16 %v1399
      %v1432 = vunpack.c.l.b16 %v1400
      %v1433 = vunpack.c.l.b16 %v1401
      %v1434 = vpack.c.b16 %v1419, %v1418
      %v1435 = vpack.c.b16 %v1421, %v1420
      %v1436 = vpack.c.b16 %v1423, %v1422
      %v1437 = vpack.c.b16 %v1425, %v1424
      %v1438 = vpack.c.b16 %v1427, %v1426
      %v1439 = vpack.c.b16 %v1429, %v1428
      %v1440 = vpack.c.b16 %v1431, %v1430
      %v1441 = vpack.c.b16 %v1433, %v1432
      %1450 = vmatprep.subr.bf16.mxu0 0
      %1451 = vmatpush1.bf16.msra.mxu0 %v1441
      %1452 = vmatprep.subr.bf16.mxu0 0
      %1453 = vmatpush1.bf16.msra.mxu0 %v1440
      %1454 = vmatprep.subr.bf16.mxu0 0
      %1455 = vmatpush1.bf16.msra.mxu0 %v1439
      %1456 = vmatprep.subr.bf16.mxu0 0
      %1457 = vmatpush1.bf16.msra.mxu0 %v1438
      %1458 = vmatprep.subr.bf16.mxu0 0
      %1459 = vmatpush1.bf16.msra.mxu0 %v1437
      %1460 = vmatprep.subr.bf16.mxu0 0
      %1461 = vmatpush1.bf16.msra.mxu0 %v1436
      %1462 = vmatprep.subr.bf16.mxu0 0
      %1463 = vmatpush1.bf16.msra.mxu0 %v1435
      %1464 = vmatprep.subr.bf16.mxu0 0
      %1465 = vmatpush1.bf16.msra.mxu0 %v1434
      %1466 = vmatprep.subr.bf16.mxu0 0
      %1467 = vmatpush2.bf16.msra.mxu0 0
      %1468 = vmatprep.subr.bf16.mxu0 0
      %1469 = vmatpush2.bf16.msra.mxu0 0
      %1470 = vmatprep.subr.bf16.mxu0 0
      %1471 = vmatpush2.bf16.msra.mxu0 0
      %1472 = vmatprep.subr.bf16.mxu0 0
      %1473 = vmatpush2.bf16.msra.mxu0 0
      %1474 = vmatprep.subr.bf16.mxu0 0
      %1475 = vmatpush2.bf16.msra.mxu0 0
      %1476 = vmatprep.subr.bf16.mxu0 0
      %1477 = vmatpush2.bf16.msra.mxu0 0
      %1478 = vmatprep.subr.bf16.mxu0 0
      %1479 = vmatpush2.bf16.msra.mxu0 0
      %1480 = vmatprep.subr.bf16.mxu0 0
      %1481 = vmatpush2.bf16.msra.mxu0 0
      %1482 = vmatprep.mubr.bf16.mxu0 0
      %1483 = vmatmul.mubr.bf16.gmra.mxu0 %v1384
      %v1484 = vpop.f32.mrf.mxu0
      %v1485 = vadd.f32 0.0, %v1484
      %v1486 = vpop.f32.mrf.mxu0
      %v1487 = vpop.f32.mrf.mxu0
      %v1488 = vadd.f32 0.0, %v1487
      %v1489 = vpop.f32.mrf.mxu0
      %1490 = vdwg.mxu0
      %v1491 = vadd.f32 %v1380, %v1485
      %v1492 = vadd.f32 %v1381, %v1488
      %v1493 = vld [vmem:[#allocation2 + $0x7] sm:$0xff]
      %v1494 = vld [vmem:[#allocation2 + $0xf] sm:$0x1]
      %v1495 = vpack.c.bf16 %v1494, %v1493
      %s1496 = scalar_lea.vmem %s3, 448
      %v1497 = vld [vmem:[%s1496] sm:$0xf]
      %v1498 = vld [vmem:[%s1496 + $0x4] sm:$0xf]
      %v1499 = vld [vmem:[%s1496 + $0x8] sm:$0xf]
      %v1500 = vld [vmem:[%s1496 + $0xc] sm:$0xf]
      %v1501 = vld [vmem:[%s1496 + $0x10] sm:$0xf]
      %v1502 = vld [vmem:[%s1496 + $0x14] sm:$0xf]
      %v1503 = vld [vmem:[%s1496 + $0x18] sm:$0xf]
      %v1504 = vld [vmem:[%s1496 + $0x1c] sm:$0xf]
      %v1505 = vld [vmem:[%s1496 + $0x20] sm:$0xf]
      %v1506 = vld [vmem:[%s1496 + $0x24] sm:$0xf]
      %v1507 = vld [vmem:[%s1496 + $0x28] sm:$0xf]
      %v1508 = vld [vmem:[%s1496 + $0x2c] sm:$0xf]
      %v1509 = vld [vmem:[%s1496 + $0x30] sm:$0xf]
      %v1510 = vld [vmem:[%s1496 + $0x34] sm:$0xf]
      %v1511 = vld [vmem:[%s1496 + $0x38] sm:$0xf]
      %v1512 = vld [vmem:[%s1496 + $0x3c] sm:$0xf]
      %v1529 = vunpack.c.l.b16 %v1497
      %v1530 = vunpack.c.l.b16 %v1498
      %v1531 = vunpack.c.l.b16 %v1499
      %v1532 = vunpack.c.l.b16 %v1500
      %v1533 = vunpack.c.l.b16 %v1501
      %v1534 = vunpack.c.l.b16 %v1502
      %v1535 = vunpack.c.l.b16 %v1503
      %v1536 = vunpack.c.l.b16 %v1504
      %v1537 = vunpack.c.l.b16 %v1505
      %v1538 = vunpack.c.l.b16 %v1506
      %v1539 = vunpack.c.l.b16 %v1507
      %v1540 = vunpack.c.l.b16 %v1508
      %v1541 = vunpack.c.l.b16 %v1509
      %v1542 = vunpack.c.l.b16 %v1510
      %v1543 = vunpack.c.l.b16 %v1511
      %v1544 = vunpack.c.l.b16 %v1512
      %v1545 = vpack.c.b16 %v1530, %v1529
      %v1546 = vpack.c.b16 %v1532, %v1531
      %v1547 = vpack.c.b16 %v1534, %v1533
      %v1548 = vpack.c.b16 %v1536, %v1535
      %v1549 = vpack.c.b16 %v1538, %v1537
      %v1550 = vpack.c.b16 %v1540, %v1539
      %v1551 = vpack.c.b16 %v1542, %v1541
      %v1552 = vpack.c.b16 %v1544, %v1543
      %1561 = vmatprep.subr.bf16.mxu0 0
      %1562 = vmatpush1.bf16.msra.mxu0 %v1552
      %1563 = vmatprep.subr.bf16.mxu0 0
      %1564 = vmatpush1.bf16.msra.mxu0 %v1551
      %1565 = vmatprep.subr.bf16.mxu0 0
      %1566 = vmatpush1.bf16.msra.mxu0 %v1550
      %1567 = vmatprep.subr.bf16.mxu0 0
      %1568 = vmatpush1.bf16.msra.mxu0 %v1549
      %1569 = vmatprep.subr.bf16.mxu0 0
      %1570 = vmatpush1.bf16.msra.mxu0 %v1548
      %1571 = vmatprep.subr.bf16.mxu0 0
      %1572 = vmatpush1.bf16.msra.mxu0 %v1547
      %1573 = vmatprep.subr.bf16.mxu0 0
      %1574 = vmatpush1.bf16.msra.mxu0 %v1546
      %1575 = vmatprep.subr.bf16.mxu0 0
      %1576 = vmatpush1.bf16.msra.mxu0 %v1545
      %1577 = vmatprep.subr.bf16.mxu0 0
      %1578 = vmatpush2.bf16.msra.mxu0 0
      %1579 = vmatprep.subr.bf16.mxu0 0
      %1580 = vmatpush2.bf16.msra.mxu0 0
      %1581 = vmatprep.subr.bf16.mxu0 0
      %1582 = vmatpush2.bf16.msra.mxu0 0
      %1583 = vmatprep.subr.bf16.mxu0 0
      %1584 = vmatpush2.bf16.msra.mxu0 0
      %1585 = vmatprep.subr.bf16.mxu0 0
      %1586 = vmatpush2.bf16.msra.mxu0 0
      %1587 = vmatprep.subr.bf16.mxu0 0
      %1588 = vmatpush2.bf16.msra.mxu0 0
      %1589 = vmatprep.subr.bf16.mxu0 0
      %1590 = vmatpush2.bf16.msra.mxu0 0
      %1591 = vmatprep.subr.bf16.mxu0 0
      %1592 = vmatpush2.bf16.msra.mxu0 0
      %1593 = vmatprep.mubr.bf16.mxu0 0
      %1594 = vmatmul.mubr.bf16.gmra.mxu0 %v1495
      %v1595 = vpop.f32.mrf.mxu0
      %v1596 = vadd.f32 0.0, %v1595
      %v1597 = vpop.f32.mrf.mxu0
      %v1598 = vpop.f32.mrf.mxu0
      %v1599 = vadd.f32 0.0, %v1598
      %v1600 = vpop.f32.mrf.mxu0
      %1601 = vdwg.mxu0
      %v1602 = vadd.f32 %v1491, %v1596
      %v1603 = vadd.f32 %v1492, %v1599
      %v1604 = vld [vmem:[%s266] sm:$0xf]
      %v1605 = vld [vmem:[%s266 + $0x4] sm:$0x1]
      %v1606 = vld [vmem:[%s4] sm:$0x3]
      %v1609 = vunpack.c.l.b16 %v1604
      %v1610 = vunpack.c.l.b16 %v1605
      %v1611 = vpack.c.b16 %v1610, %v1609
      %v1613 = vsel %vm282, %v1611, 0
      %v1616 = vsel %vm286, %v1606, 0
      %1618 = vmatprep.subr.bf16.mxu0 0
      %1619 = vmatpush1.bf16.msra.mxu0 0
      %1620 = vmatprep.subr.bf16.mxu0 0
      %1621 = vmatpush1.bf16.msra.mxu0 0
      %1622 = vmatprep.subr.bf16.mxu0 0
      %1623 = vmatpush1.bf16.msra.mxu0 0
      %1624 = vmatprep.subr.bf16.mxu0 0
      %1625 = vmatpush1.bf16.msra.mxu0 0
      %1626 = vmatprep.subr.bf16.mxu0 0
      %1627 = vmatpush1.bf16.msra.mxu0 0
      %1628 = vmatprep.subr.bf16.mxu0 0
      %1629 = vmatpush1.bf16.msra.mxu0 0
      %1630 = vmatprep.subr.bf16.mxu0 0
      %1631 = vmatpush1.bf16.msra.mxu0 0
      %1632 = vmatprep.subr.bf16.mxu0 0
      %1633 = vmatpush1.bf16.msra.mxu0 %v1616
      %1634 = vmatprep.subr.bf16.mxu0 0
      %1635 = vmatpush2.bf16.msra.mxu0 0
      %1636 = vmatprep.subr.bf16.mxu0 0
      %1637 = vmatpush2.bf16.msra.mxu0 0
      %1638 = vmatprep.subr.bf16.mxu0 0
      %1639 = vmatpush2.bf16.msra.mxu0 0
      %1640 = vmatprep.subr.bf16.mxu0 0
      %1641 = vmatpush2.bf16.msra.mxu0 0
      %1642 = vmatprep.subr.bf16.mxu0 0
      %1643 = vmatpush2.bf16.msra.mxu0 0
      %1644 = vmatprep.subr.bf16.mxu0 0
      %1645 = vmatpush2.bf16.msra.mxu0 0
      %1646 = vmatprep.subr.bf16.mxu0 0
      %1647 = vmatpush2.bf16.msra.mxu0 0
      %1648 = vmatprep.subr.bf16.mxu0 0
      %1649 = vmatpush2.bf16.msra.mxu0 0
      %1650 = vmatprep.mubr.bf16.mxu0 0
      %1651 = vmatmul.mubr.bf16.gmra.mxu0 %v1613
      %v1652 = vpop.f32.mrf.mxu0
      %v1653 = vadd.f32 0.0, %v1652
      %v1654 = vpop.f32.mrf.mxu0
      %v1655 = vpop.f32.mrf.mxu0
      %v1656 = vadd.f32 0.0, %v1655
      %v1657 = vpop.f32.mrf.mxu0
      %1658 = vdwg.mxu0
      %v1659 = vadd.f32 %v1602, %v1653
      %v1660 = vadd.f32 %v1603, %v1656
      %v1661 = vlaneseq
      %v1662 = vshrl.u32 %v1661, 7
      %v1663 = vsub.s32 3, %v1662
      %v1664 = vrot.slane %v273, %v1663
      %v1665 = vadd.f32 %v1659, %v1664
      %v1666 = vadd.f32 %v1660, %v1664
      %v1667 = vmax.f32 %v1665, 0.0
      %v1668 = vmax.f32 %v1666, 0.0
      %v1669 = vlaneseq
      %v1670 = vshrl.u32 %v1669, 7
      %v1671 = vsub.s32 4, %v1670
      %v1672 = vrot.slane %v273, %v1671
      %v1673 = vmul.f32 %v1667, %v1672
      %v1674 = vmul.f32 %v1668, %v1672
      %v1675 = vlaneseq
      %v1676 = vshrl.u32 %v1675, 7
      %v1677 = vsub.s32 5, %v1676
      %v1678 = vrot.slane %v273, %v1677
      %v1679 = vadd.f32 %v1673, %v1678
      %v1680 = vadd.f32 %v1674, %v1678
      %1681 = vst [vmem:[%s271] sm:$0xff] %v1679
      %1682 = vst [vmem:[%s271 + $0x8] sm:$0x1] %v1680
      %p1683 = scmp.lt.s32.totalorder %s17, 1
      %s1684 = scalar_select %p1683, %s17, 1
      %s1685 = smul.addr %s1684, 2
      %s1686 = smul.addr %s1685, 8
      %s1687 = scalar_lea.vmem %s6, %s1686
      // Predicated region
      $region45: #{residual_block_forward.1} parent=43 // pred_check
        %p1688 = pneg %p171
      $region46: #{residual_block_forward.1} parent=43 // pred_check_branch
        %1690 = sbr.rel (%p1688) target = $region48
      $region47: #{residual_block_forward.1} parent=43 // pred_region
        _
      $region48: #{residual_block_forward.1} parent=43 // pred_fallthru
        _
    $region44: #{residual_block_forward.1} parent=5 // pred_fallthru
      _
    %p1691 = scmp.le.s32.totalorder 2, %s12
    // Predicated region
    $region49: #{residual_block_forward.1} parent=5 // pred_check
      %p1692 = pneg %p1691
    $region50: #{residual_block_forward.1} parent=5 // pred_check_branch
      %1694 = sbr.rel (%p1692) target = $region52
    $region51: #{residual_block_forward.1} parent=5 // pred_region
      %s1695 = ssub.s32 %s12, 2
      // Predicated region
      $region53: #{residual_block_forward.1} parent=51 // pred_check
        %p1696 = pneg %p177
      $region54: #{residual_block_forward.1} parent=51 // pred_check_branch
        %1698 = sbr.rel (%p1696) target = $region56
      $region55: #{residual_block_forward.1} parent=51 // pred_region
        %p1699 = scmp.lt.s32.totalorder %s18, 1
        %s1700 = scalar_select %p1699, %s18, 1
        %s1701 = smul.addr %s1700, 2
        %s1702 = smul.addr %s1701, 8
        %s1703 = scalar_lea.vmem %s6, %s1702
      $region56: #{residual_block_forward.1} parent=51 // pred_fallthru
        _
    $region52: #{residual_block_forward.1} parent=5 // pred_fallthru
      _
  $region6: #{residual_block_forward.1} parent=0 // loop_footer
    %s16 = sadd.s32 1, %s12
  $region7: #{residual_block_forward.1} parent=0 // loop_footer_branch
    %11 = sbr.rel target = $region3
  $region8: #{residual_block_forward.1} parent=0 // loop_exit
    _

</llo_original>
